<compile_context>
chip_gen: v6e
topology: v6e:2x2x1
jax: 0.10.0
libtpu: 0.0.40
codegen_flags: <defaults>
</compile_context>

<pallas_src>
import functools

import jax
import jax.numpy as jnp
import numpy as np
from jax import lax
from jax.experimental import pallas as pl
from jax.experimental.pallas import tpu as pltpu

I_DIM = 20          # GRU input size
H_DIM = 30          # GRU hidden size
O_DIM = 1           # Linear output size
GATE_STRIDE = 128   # each gate (r, z, n) gets its own 128-lane slot


def _gru_linear_kernel(x_ref, wih_ref, whh_ref, bgi_ref, bhn_ref, wo_ref, bo_ref,
                       o_ref, hs_ref, *, seq_len, batch):
    """Whole forward pass in one invocation.

    x_ref  : (T*B, I)   time-major flattened inputs (row = t*B + b)
    wih_ref: (I, 3G)    input->gates weights, gate g in lanes [g*G, g*G+H)
    whh_ref: (H, 3G)    hidden->gates weights, same padded layout
    bgi_ref: (1, 3G)    folded bias for the input projection (r: b_ir+b_hr,
                        z: b_iz+b_hz, n: b_in)
    bhn_ref: (1, H)     b_hn (must be scaled by r inside the recurrence)
    wo_ref : (1, H)     linear weight (transposed)
    bo_ref : (1, 1)     linear bias
    o_ref  : (T*B, 1)   output, time-major flattened
    hs_ref : (T*B, H)   VMEM scratch holding the full h_t history
    """
    T, B, H, G = seq_len, batch, H_DIM, GATE_STRIDE

    # ---- Phase 1 (off the serial chain): batched input projection -----------
    gi_all = jnp.dot(x_ref[...], wih_ref[...],
                     preferred_element_type=jnp.float32) + bgi_ref[...]   # (T*B, 3G)

    w_hh = whh_ref[...]      # (H, 3G)
    b_hn = bhn_ref[...]      # (1, H)

    # ---- Phase 2: sequential recurrence (unrolled; all slices static) -------
    h = jnp.zeros((B, H), jnp.float32)
    for t in range(T):
        gi_t = gi_all[t * B:(t + 1) * B, :]                                # (B, 3G)
        gh = jnp.dot(h, w_hh, preferred_element_type=jnp.float32)         # (B, 3G)
        r = jax.nn.sigmoid(gi_t[:, 0:H] + gh[:, 0:H])
        z = jax.nn.sigmoid(gi_t[:, G:G + H] + gh[:, G:G + H])
        n = jnp.tanh(gi_t[:, 2 * G:2 * G + H] + r * (gh[:, 2 * G:2 * G + H] + b_hn))
        h = (1.0 - z) * n + z * h                                          # (B, H)
        hs_ref[t * B:(t + 1) * B, :] = h

    # ---- Phase 3 (off the serial chain): Linear(30->1) + single store -------
    hs = hs_ref[...]                                                       # (T*B, H)
    y = jnp.sum(hs * wo_ref[...], axis=-1, keepdims=True) + bo_ref[...]    # (T*B, 1)
    o_ref[...] = y.astype(o_ref.dtype)


def _pad_gate_cols(w):
    """(K, 3H) gate-major -> (K, 3*GATE_STRIDE): each gate in its own 128-lane slot."""
    parts = []
    for g in range(3):
        blk = w[:, g * H_DIM:(g + 1) * H_DIM]
        parts.append(jnp.pad(blk, ((0, 0), (0, GATE_STRIDE - H_DIM))))
    return jnp.concatenate(parts, axis=1)


def seq_model_forward(x, params):
    """x: (B, T, I) float32 -> (B, T, 1) float32 (matches PyTorch SeqModel)."""
    B, T, _ = x.shape
    w_ih, w_hh, b_ih, b_hh, w_out, b_out = params

    # ---- one-time parameter packing (plain XLA, outside the kernel) ---------
    w_ih_p = _pad_gate_cols(w_ih)                               # (I, 3G)
    w_hh_p = _pad_gate_cols(w_hh)                               # (H, 3G)
    # Fold r/z biases into the batched input projection; n-slot keeps only b_in
    # because b_hn must be multiplied by r inside the loop.
    b_sum = b_ih + b_hh
    b_gi = _pad_gate_cols(jnp.concatenate(
        [b_sum[:, :2 * H_DIM], b_ih[:, 2 * H_DIM:]], axis=1))   # (1, 3G)
    b_hn = b_hh[:, 2 * H_DIM:]                                  # (1, H)
    w_out_row = jnp.transpose(w_out)                            # (1, H)

    # Time-major flatten so each timestep's rows are contiguous sublanes
    # (row = t*B + b).  ~1 KB of layout plumbing at these sizes.
    x2d = jnp.transpose(x, (1, 0, 2)).reshape(T * B, I_DIM)

    kernel = functools.partial(_gru_linear_kernel, seq_len=T, batch=B)
    vmem = pltpu.MemorySpace.VMEM
    out2d = pl.pallas_call(
        kernel,
        out_shape=jax.ShapeDtypeStruct((T * B, O_DIM), jnp.float32),
        in_specs=[pl.BlockSpec(memory_space=vmem)] * 7,
        out_specs=pl.BlockSpec(memory_space=vmem),
        scratch_shapes=[pltpu.VMEM((T * B, H_DIM), jnp.float32)],   # h_t history
    )(x2d, w_ih_p, w_hh_p, b_gi, b_hn, w_out_row, b_out)
    # NOTE: if B grows, shard the batch across v7x's two TensorCores (parallel
    # grid axis over a B split); at B=2 the recurrence is strictly sequential.

    # (T*B, 1) time-major -> (B, T, 1) batch_first (64 bytes here).
    return jnp.transpose(out2d.reshape(T, B, O_DIM), (1, 0, 2))


def make_params(key):
    """Deterministic params matching PyTorch GRU(20,30) + Linear(30,1) shapes.

    PyTorch stores weight_ih_l0 as (3H, I) and weight_hh_l0 as (3H, H) with gate
    order (r, z, n); we keep the transposed (I, 3H) / (H, 3H) layout so the kernel
    can do x @ W directly.  Loading a real checkpoint requires transposing those.
    """
    k = jax.random.split(key, 6)
    s = 1.0 / np.sqrt(H_DIM)
    w_ih = jax.random.uniform(k[0], (I_DIM, 3 * H_DIM), jnp.float32, -s, s)
    w_hh = jax.random.uniform(k[1], (H_DIM, 3 * H_DIM), jnp.float32, -s, s)
    b_ih = jax.random.uniform(k[2], (1, 3 * H_DIM), jnp.float32, -s, s)
    b_hh = jax.random.uniform(k[3], (1, 3 * H_DIM), jnp.float32, -s, s)
    w_out = jax.random.uniform(k[4], (H_DIM, O_DIM), jnp.float32, -s, s)
    b_out = jax.random.uniform(k[5], (1, O_DIM), jnp.float32, -s, s)
    return w_ih, w_hh, b_ih, b_hh, w_out, b_out


def seq_model_reference(x, params):
    """Pure-JAX reference (lax.scan) mirroring torch.nn.GRU semantics."""
    w_ih, w_hh, b_ih, b_hh, w_out, b_out = params

    def step(h, x_t):
        gi = x_t @ w_ih + b_ih
        gh = h @ w_hh + b_hh
        i_r, i_z, i_n = jnp.split(gi, 3, axis=-1)
        h_r, h_z, h_n = jnp.split(gh, 3, axis=-1)
        r = jax.nn.sigmoid(i_r + h_r)
        z = jax.nn.sigmoid(i_z + h_z)
        n = jnp.tanh(i_n + r * h_n)
        h_new = (1.0 - z) * n + z * h
        return h_new, h_new

    B = x.shape[0]
    h0 = jnp.zeros((B, H_DIM), jnp.float32)
    _, hs = lax.scan(step, h0, jnp.transpose(x, (1, 0, 2)))   # (T, B, H)
    out = hs @ w_out + b_out                                  # (T, B, 1)
    return jnp.transpose(out, (1, 0, 2))                      # (B, T, 1)


if __name__ == "__main__":
    key = jax.random.PRNGKey(0)
    k_x, k_p = jax.random.split(key)

    B, T = 2, 8
    x = jax.random.normal(k_x, (B, T, I_DIM), jnp.float32)
    params = make_params(k_p)

    out = jax.block_until_ready(seq_model_forward(x, params))
    ref = jax.block_until_ready(seq_model_reference(x, params))

    assert out.shape == (B, T, 1), out.shape
    np.testing.assert_allclose(np.asarray(out), np.asarray(ref), rtol=1e-5, atol=1e-5)

    print("KERNEL_OK")
</pallas_src>

<mosaic_0001>
module attributes {stable_mosaic.version = 11 : i64} {
  func.func @_gru_linear_kernel(%arg0: memref<16x20xf32, #tpu.memory_space<vmem>>, %arg1: memref<20x384xf32, #tpu.memory_space<vmem>>, %arg2: memref<30x384xf32, #tpu.memory_space<vmem>>, %arg3: memref<1x384xf32, #tpu.memory_space<vmem>>, %arg4: memref<1x30xf32, #tpu.memory_space<vmem>>, %arg5: memref<1x30xf32, #tpu.memory_space<vmem>>, %arg6: memref<1x1xf32, #tpu.memory_space<vmem>>, %arg7: memref<16x1xf32, #tpu.memory_space<vmem>>, %arg8: memref<16x30xf32, #tpu.memory_space<vmem>>) attributes {dimension_semantics = [], scalar_prefetch = 0 : i64, scratch_operands = 1 : i64, tpu.core_type = #tpu.core_type<tc>} {
    %c0 = arith.constant 0 : index
    %c0_0 = arith.constant 0 : index
    %0 = vector.load %arg0[%c0, %c0_0] : memref<16x20xf32, #tpu.memory_space<vmem>>, vector<16x20xf32>
    %c0_1 = arith.constant 0 : index
    %c0_2 = arith.constant 0 : index
    %1 = vector.load %arg1[%c0_1, %c0_2] : memref<20x384xf32, #tpu.memory_space<vmem>>, vector<20x384xf32>
    %cst = arith.constant dense<0.000000e+00> : vector<16x384xf32>
    %2 = tpu.matmul %0, %1, %cst {dimension_numbers = #tpu.dot_dimension_numbers<[1], [0], [0], [1], [0, 0, 1, 1], [], []>} : vector<16x20xf32>, vector<20x384xf32>, vector<16x384xf32> -> vector<16x384xf32>
    %c0_3 = arith.constant 0 : index
    %c0_4 = arith.constant 0 : index
    %3 = vector.load %arg3[%c0_3, %c0_4] : memref<1x384xf32, #tpu.memory_space<vmem>>, vector<1x384xf32>
    %4 = vector.broadcast %3 : vector<1x384xf32> to vector<16x384xf32>
    %5 = arith.addf %2, %4 : vector<16x384xf32>
    %c0_5 = arith.constant 0 : index
    %c0_6 = arith.constant 0 : index
    %6 = vector.load %arg2[%c0_5, %c0_6] : memref<30x384xf32, #tpu.memory_space<vmem>>, vector<30x384xf32>
    %c0_7 = arith.constant 0 : index
    %c0_8 = arith.constant 0 : index
    %7 = vector.load %arg4[%c0_7, %c0_8] : memref<1x30xf32, #tpu.memory_space<vmem>>, vector<1x30xf32>
    %cst_9 = arith.constant 0.000000e+00 : f32
    %8 = vector.broadcast %cst_9 : f32 to vector<2x30xf32>
    %9 = vector.extract_strided_slice %5 {offsets = [0, 0], sizes = [2, 384], strides = [1, 1]} : vector<16x384xf32> to vector<2x384xf32>
    %cst_10 = arith.constant dense<0.000000e+00> : vector<2x384xf32>
    %10 = tpu.matmul %8, %6, %cst_10 {dimension_numbers = #tpu.dot_dimension_numbers<[1], [0], [0], [1], [0, 0, 1, 1], [], []>} : vector<2x30xf32>, vector<30x384xf32>, vector<2x384xf32> -> vector<2x384xf32>
    %11 = vector.extract_strided_slice %9 {offsets = [0, 0], sizes = [2, 30], strides = [1, 1]} : vector<2x384xf32> to vector<2x30xf32>
    %12 = vector.extract_strided_slice %10 {offsets = [0, 0], sizes = [2, 30], strides = [1, 1]} : vector<2x384xf32> to vector<2x30xf32>
    %13 = arith.addf %11, %12 : vector<2x30xf32>
    %14 = arith.negf %13 : vector<2x30xf32>
    %15 = math.exp %14 : vector<2x30xf32>
    %cst_11 = arith.constant 1.000000e+00 : f32
    %16 = vector.broadcast %cst_11 : f32 to vector<2x30xf32>
    %17 = arith.addf %16, %15 : vector<2x30xf32>
    %18 = arith.divf %16, %17 : vector<2x30xf32>
    %19 = vector.extract_strided_slice %9 {offsets = [0, 128], sizes = [2, 30], strides = [1, 1]} : vector<2x384xf32> to vector<2x30xf32>
    %20 = vector.extract_strided_slice %10 {offsets = [0, 128], sizes = [2, 30], strides = [1, 1]} : vector<2x384xf32> to vector<2x30xf32>
    %21 = arith.addf %19, %20 : vector<2x30xf32>
    %22 = arith.negf %21 : vector<2x30xf32>
    %23 = math.exp %22 : vector<2x30xf32>
    %cst_12 = arith.constant 1.000000e+00 : f32
    %24 = vector.broadcast %cst_12 : f32 to vector<2x30xf32>
    %25 = arith.addf %24, %23 : vector<2x30xf32>
    %26 = arith.divf %24, %25 : vector<2x30xf32>
    %27 = vector.extract_strided_slice %9 {offsets = [0, 256], sizes = [2, 30], strides = [1, 1]} : vector<2x384xf32> to vector<2x30xf32>
    %28 = vector.extract_strided_slice %10 {offsets = [0, 256], sizes = [2, 30], strides = [1, 1]} : vector<2x384xf32> to vector<2x30xf32>
    %29 = vector.broadcast %7 : vector<1x30xf32> to vector<2x30xf32>
    %30 = arith.addf %28, %29 : vector<2x30xf32>
    %31 = arith.mulf %18, %30 : vector<2x30xf32>
    %32 = arith.addf %27, %31 : vector<2x30xf32>
    %33 = math.tanh %32 : vector<2x30xf32>
    %cst_13 = arith.constant 1.000000e+00 : f32
    %34 = vector.broadcast %cst_13 : f32 to vector<2x30xf32>
    %35 = arith.subf %34, %26 : vector<2x30xf32>
    %36 = arith.mulf %35, %33 : vector<2x30xf32>
    %37 = arith.mulf %26, %8 : vector<2x30xf32>
    %38 = arith.addf %36, %37 : vector<2x30xf32>
    %c0_14 = arith.constant 0 : index
    %c0_15 = arith.constant 0 : index
    %39 = vector.load %arg8[%c0_14, %c0_15] : memref<16x30xf32, #tpu.memory_space<vmem>>, vector<2x30xf32>
    tpu.vector_store %arg8[%c0_14, %c0_15], %38 {strides = array<i32>} : memref<16x30xf32, #tpu.memory_space<vmem>>, vector<2x30xf32>,
    %40 = vector.extract_strided_slice %5 {offsets = [2, 0], sizes = [2, 384], strides = [1, 1]} : vector<16x384xf32> to vector<2x384xf32>
    %cst_16 = arith.constant dense<0.000000e+00> : vector<2x384xf32>
    %41 = tpu.matmul %38, %6, %cst_16 {dimension_numbers = #tpu.dot_dimension_numbers<[1], [0], [0], [1], [0, 0, 1, 1], [], []>} : vector<2x30xf32>, vector<30x384xf32>, vector<2x384xf32> -> vector<2x384xf32>
    %42 = vector.extract_strided_slice %40 {offsets = [0, 0], sizes = [2, 30], strides = [1, 1]} : vector<2x384xf32> to vector<2x30xf32>
    %43 = vector.extract_strided_slice %41 {offsets = [0, 0], sizes = [2, 30], strides = [1, 1]} : vector<2x384xf32> to vector<2x30xf32>
    %44 = arith.addf %42, %43 : vector<2x30xf32>
    %45 = arith.negf %44 : vector<2x30xf32>
    %46 = math.exp %45 : vector<2x30xf32>
    %cst_17 = arith.constant 1.000000e+00 : f32
    %47 = vector.broadcast %cst_17 : f32 to vector<2x30xf32>
    %48 = arith.addf %47, %46 : vector<2x30xf32>
    %49 = arith.divf %47, %48 : vector<2x30xf32>
    %50 = vector.extract_strided_slice %40 {offsets = [0, 128], sizes = [2, 30], strides = [1, 1]} : vector<2x384xf32> to vector<2x30xf32>
    %51 = vector.extract_strided_slice %41 {offsets = [0, 128], sizes = [2, 30], strides = [1, 1]} : vector<2x384xf32> to vector<2x30xf32>
    %52 = arith.addf %50, %51 : vector<2x30xf32>
    %53 = arith.negf %52 : vector<2x30xf32>
    %54 = math.exp %53 : vector<2x30xf32>
    %cst_18 = arith.constant 1.000000e+00 : f32
    %55 = vector.broadcast %cst_18 : f32 to vector<2x30xf32>
    %56 = arith.addf %55, %54 : vector<2x30xf32>
    %57 = arith.divf %55, %56 : vector<2x30xf32>
    %58 = vector.extract_strided_slice %40 {offsets = [0, 256], sizes = [2, 30], strides = [1, 1]} : vector<2x384xf32> to vector<2x30xf32>
    %59 = vector.extract_strided_slice %41 {offsets = [0, 256], sizes = [2, 30], strides = [1, 1]} : vector<2x384xf32> to vector<2x30xf32>
    %60 = vector.broadcast %7 : vector<1x30xf32> to vector<2x30xf32>
    %61 = arith.addf %59, %60 : vector<2x30xf32>
    %62 = arith.mulf %49, %61 : vector<2x30xf32>
    %63 = arith.addf %58, %62 : vector<2x30xf32>
    %64 = math.tanh %63 : vector<2x30xf32>
    %cst_19 = arith.constant 1.000000e+00 : f32
    %65 = vector.broadcast %cst_19 : f32 to vector<2x30xf32>
    %66 = arith.subf %65, %57 : vector<2x30xf32>
    %67 = arith.mulf %66, %64 : vector<2x30xf32>
    %68 = arith.mulf %57, %38 : vector<2x30xf32>
    %69 = arith.addf %67, %68 : vector<2x30xf32>
    %c2 = arith.constant 2 : index
    %c0_20 = arith.constant 0 : index
    %70 = vector.load %arg8[%c2, %c0_20] : memref<16x30xf32, #tpu.memory_space<vmem>>, vector<2x30xf32>
    tpu.vector_store %arg8[%c2, %c0_20], %69 {strides = array<i32>} : memref<16x30xf32, #tpu.memory_space<vmem>>, vector<2x30xf32>,
    %71 = vector.extract_strided_slice %5 {offsets = [4, 0], sizes = [2, 384], strides = [1, 1]} : vector<16x384xf32> to vector<2x384xf32>
    %cst_21 = arith.constant dense<0.000000e+00> : vector<2x384xf32>
    %72 = tpu.matmul %69, %6, %cst_21 {dimension_numbers = #tpu.dot_dimension_numbers<[1], [0], [0], [1], [0, 0, 1, 1], [], []>} : vector<2x30xf32>, vector<30x384xf32>, vector<2x384xf32> -> vector<2x384xf32>
    %73 = vector.extract_strided_slice %71 {offsets = [0, 0], sizes = [2, 30], strides = [1, 1]} : vector<2x384xf32> to vector<2x30xf32>
    %74 = vector.extract_strided_slice %72 {offsets = [0, 0], sizes = [2, 30], strides = [1, 1]} : vector<2x384xf32> to vector<2x30xf32>
    %75 = arith.addf %73, %74 : vector<2x30xf32>
    %76 = arith.negf %75 : vector<2x30xf32>
    %77 = math.exp %76 : vector<2x30xf32>
    %cst_22 = arith.constant 1.000000e+00 : f32
    %78 = vector.broadcast %cst_22 : f32 to vector<2x30xf32>
    %79 = arith.addf %78, %77 : vector<2x30xf32>
    %80 = arith.divf %78, %79 : vector<2x30xf32>
    %81 = vector.extract_strided_slice %71 {offsets = [0, 128], sizes = [2, 30], strides = [1, 1]} : vector<2x384xf32> to vector<2x30xf32>
    %82 = vector.extract_strided_slice %72 {offsets = [0, 128], sizes = [2, 30], strides = [1, 1]} : vector<2x384xf32> to vector<2x30xf32>
    %83 = arith.addf %81, %82 : vector<2x30xf32>
    %84 = arith.negf %83 : vector<2x30xf32>
    %85 = math.exp %84 : vector<2x30xf32>
    %cst_23 = arith.constant 1.000000e+00 : f32
    %86 = vector.broadcast %cst_23 : f32 to vector<2x30xf32>
    %87 = arith.addf %86, %85 : vector<2x30xf32>
    %88 = arith.divf %86, %87 : vector<2x30xf32>
    %89 = vector.extract_strided_slice %71 {offsets = [0, 256], sizes = [2, 30], strides = [1, 1]} : vector<2x384xf32> to vector<2x30xf32>
    %90 = vector.extract_strided_slice %72 {offsets = [0, 256], sizes = [2, 30], strides = [1, 1]} : vector<2x384xf32> to vector<2x30xf32>
    %91 = vector.broadcast %7 : vector<1x30xf32> to vector<2x30xf32>
    %92 = arith.addf %90, %91 : vector<2x30xf32>
    %93 = arith.mulf %80, %92 : vector<2x30xf32>
    %94 = arith.addf %89, %93 : vector<2x30xf32>
    %95 = math.tanh %94 : vector<2x30xf32>
    %cst_24 = arith.constant 1.000000e+00 : f32
    %96 = vector.broadcast %cst_24 : f32 to vector<2x30xf32>
    %97 = arith.subf %96, %88 : vector<2x30xf32>
    %98 = arith.mulf %97, %95 : vector<2x30xf32>
    %99 = arith.mulf %88, %69 : vector<2x30xf32>
    %100 = arith.addf %98, %99 : vector<2x30xf32>
    %c4 = arith.constant 4 : index
    %c0_25 = arith.constant 0 : index
    %101 = vector.load %arg8[%c4, %c0_25] : memref<16x30xf32, #tpu.memory_space<vmem>>, vector<2x30xf32>
    tpu.vector_store %arg8[%c4, %c0_25], %100 {strides = array<i32>} : memref<16x30xf32, #tpu.memory_space<vmem>>, vector<2x30xf32>,
    %102 = vector.extract_strided_slice %5 {offsets = [6, 0], sizes = [2, 384], strides = [1, 1]} : vector<16x384xf32> to vector<2x384xf32>
    %cst_26 = arith.constant dense<0.000000e+00> : vector<2x384xf32>
    %103 = tpu.matmul %100, %6, %cst_26 {dimension_numbers = #tpu.dot_dimension_numbers<[1], [0], [0], [1], [0, 0, 1, 1], [], []>} : vector<2x30xf32>, vector<30x384xf32>, vector<2x384xf32> -> vector<2x384xf32>
    %104 = vector.extract_strided_slice %102 {offsets = [0, 0], sizes = [2, 30], strides = [1, 1]} : vector<2x384xf32> to vector<2x30xf32>
    %105 = vector.extract_strided_slice %103 {offsets = [0, 0], sizes = [2, 30], strides = [1, 1]} : vector<2x384xf32> to vector<2x30xf32>
    %106 = arith.addf %104, %105 : vector<2x30xf32>
    %107 = arith.negf %106 : vector<2x30xf32>
    %108 = math.exp %107 : vector<2x30xf32>
    %cst_27 = arith.constant 1.000000e+00 : f32
    %109 = vector.broadcast %cst_27 : f32 to vector<2x30xf32>
    %110 = arith.addf %109, %108 : vector<2x30xf32>
    %111 = arith.divf %109, %110 : vector<2x30xf32>
    %112 = vector.extract_strided_slice %102 {offsets = [0, 128], sizes = [2, 30], strides = [1, 1]} : vector<2x384xf32> to vector<2x30xf32>
    %113 = vector.extract_strided_slice %103 {offsets = [0, 128], sizes = [2, 30], strides = [1, 1]} : vector<2x384xf32> to vector<2x30xf32>
    %114 = arith.addf %112, %113 : vector<2x30xf32>
    %115 = arith.negf %114 : vector<2x30xf32>
    %116 = math.exp %115 : vector<2x30xf32>
    %cst_28 = arith.constant 1.000000e+00 : f32
    %117 = vector.broadcast %cst_28 : f32 to vector<2x30xf32>
    %118 = arith.addf %117, %116 : vector<2x30xf32>
    %119 = arith.divf %117, %118 : vector<2x30xf32>
    %120 = vector.extract_strided_slice %102 {offsets = [0, 256], sizes = [2, 30], strides = [1, 1]} : vector<2x384xf32> to vector<2x30xf32>
    %121 = vector.extract_strided_slice %103 {offsets = [0, 256], sizes = [2, 30], strides = [1, 1]} : vector<2x384xf32> to vector<2x30xf32>
    %122 = vector.broadcast %7 : vector<1x30xf32> to vector<2x30xf32>
    %123 = arith.addf %121, %122 : vector<2x30xf32>
    %124 = arith.mulf %111, %123 : vector<2x30xf32>
    %125 = arith.addf %120, %124 : vector<2x30xf32>
    %126 = math.tanh %125 : vector<2x30xf32>
    %cst_29 = arith.constant 1.000000e+00 : f32
    %127 = vector.broadcast %cst_29 : f32 to vector<2x30xf32>
    %128 = arith.subf %127, %119 : vector<2x30xf32>
    %129 = arith.mulf %128, %126 : vector<2x30xf32>
    %130 = arith.mulf %119, %100 : vector<2x30xf32>
    %131 = arith.addf %129, %130 : vector<2x30xf32>
    %c6 = arith.constant 6 : index
    %c0_30 = arith.constant 0 : index
    %132 = vector.load %arg8[%c6, %c0_30] : memref<16x30xf32, #tpu.memory_space<vmem>>, vector<2x30xf32>
    tpu.vector_store %arg8[%c6, %c0_30], %131 {strides = array<i32>} : memref<16x30xf32, #tpu.memory_space<vmem>>, vector<2x30xf32>,
    %133 = vector.extract_strided_slice %5 {offsets = [8, 0], sizes = [2, 384], strides = [1, 1]} : vector<16x384xf32> to vector<2x384xf32>
    %cst_31 = arith.constant dense<0.000000e+00> : vector<2x384xf32>
    %134 = tpu.matmul %131, %6, %cst_31 {dimension_numbers = #tpu.dot_dimension_numbers<[1], [0], [0], [1], [0, 0, 1, 1], [], []>} : vector<2x30xf32>, vector<30x384xf32>, vector<2x384xf32> -> vector<2x384xf32>
    %135 = vector.extract_strided_slice %133 {offsets = [0, 0], sizes = [2, 30], strides = [1, 1]} : vector<2x384xf32> to vector<2x30xf32>
    %136 = vector.extract_strided_slice %134 {offsets = [0, 0], sizes = [2, 30], strides = [1, 1]} : vector<2x384xf32> to vector<2x30xf32>
    %137 = arith.addf %135, %136 : vector<2x30xf32>
    %138 = arith.negf %137 : vector<2x30xf32>
    %139 = math.exp %138 : vector<2x30xf32>
    %cst_32 = arith.constant 1.000000e+00 : f32
    %140 = vector.broadcast %cst_32 : f32 to vector<2x30xf32>
    %141 = arith.addf %140, %139 : vector<2x30xf32>
    %142 = arith.divf %140, %141 : vector<2x30xf32>
    %143 = vector.extract_strided_slice %133 {offsets = [0, 128], sizes = [2, 30], strides = [1, 1]} : vector<2x384xf32> to vector<2x30xf32>
    %144 = vector.extract_strided_slice %134 {offsets = [0, 128], sizes = [2, 30], strides = [1, 1]} : vector<2x384xf32> to vector<2x30xf32>
    %145 = arith.addf %143, %144 : vector<2x30xf32>
    %146 = arith.negf %145 : vector<2x30xf32>
    %147 = math.exp %146 : vector<2x30xf32>
    %cst_33 = arith.constant 1.000000e+00 : f32
    %148 = vector.broadcast %cst_33 : f32 to vector<2x30xf32>
    %149 = arith.addf %148, %147 : vector<2x30xf32>
    %150 = arith.divf %148, %149 : vector<2x30xf32>
    %151 = vector.extract_strided_slice %133 {offsets = [0, 256], sizes = [2, 30], strides = [1, 1]} : vector<2x384xf32> to vector<2x30xf32>
    %152 = vector.extract_strided_slice %134 {offsets = [0, 256], sizes = [2, 30], strides = [1, 1]} : vector<2x384xf32> to vector<2x30xf32>
    %153 = vector.broadcast %7 : vector<1x30xf32> to vector<2x30xf32>
    %154 = arith.addf %152, %153 : vector<2x30xf32>
    %155 = arith.mulf %142, %154 : vector<2x30xf32>
    %156 = arith.addf %151, %155 : vector<2x30xf32>
    %157 = math.tanh %156 : vector<2x30xf32>
    %cst_34 = arith.constant 1.000000e+00 : f32
    %158 = vector.broadcast %cst_34 : f32 to vector<2x30xf32>
    %159 = arith.subf %158, %150 : vector<2x30xf32>
    %160 = arith.mulf %159, %157 : vector<2x30xf32>
    %161 = arith.mulf %150, %131 : vector<2x30xf32>
    %162 = arith.addf %160, %161 : vector<2x30xf32>
    %c8 = arith.constant 8 : index
    %c0_35 = arith.constant 0 : index
    %163 = vector.load %arg8[%c8, %c0_35] : memref<16x30xf32, #tpu.memory_space<vmem>>, vector<2x30xf32>
    tpu.vector_store %arg8[%c8, %c0_35], %162 {strides = array<i32>} : memref<16x30xf32, #tpu.memory_space<vmem>>, vector<2x30xf32>,
    %164 = vector.extract_strided_slice %5 {offsets = [10, 0], sizes = [2, 384], strides = [1, 1]} : vector<16x384xf32> to vector<2x384xf32>
    %cst_36 = arith.constant dense<0.000000e+00> : vector<2x384xf32>
    %165 = tpu.matmul %162, %6, %cst_36 {dimension_numbers = #tpu.dot_dimension_numbers<[1], [0], [0], [1], [0, 0, 1, 1], [], []>} : vector<2x30xf32>, vector<30x384xf32>, vector<2x384xf32> -> vector<2x384xf32>
    %166 = vector.extract_strided_slice %164 {offsets = [0, 0], sizes = [2, 30], strides = [1, 1]} : vector<2x384xf32> to vector<2x30xf32>
    %167 = vector.extract_strided_slice %165 {offsets = [0, 0], sizes = [2, 30], strides = [1, 1]} : vector<2x384xf32> to vector<2x30xf32>
    %168 = arith.addf %166, %167 : vector<2x30xf32>
    %169 = arith.negf %168 : vector<2x30xf32>
    %170 = math.exp %169 : vector<2x30xf32>
    %cst_37 = arith.constant 1.000000e+00 : f32
    %171 = vector.broadcast %cst_37 : f32 to vector<2x30xf32>
    %172 = arith.addf %171, %170 : vector<2x30xf32>
    %173 = arith.divf %171, %172 : vector<2x30xf32>
    %174 = vector.extract_strided_slice %164 {offsets = [0, 128], sizes = [2, 30], strides = [1, 1]} : vector<2x384xf32> to vector<2x30xf32>
    %175 = vector.extract_strided_slice %165 {offsets = [0, 128], sizes = [2, 30], strides = [1, 1]} : vector<2x384xf32> to vector<2x30xf32>
    %176 = arith.addf %174, %175 : vector<2x30xf32>
    %177 = arith.negf %176 : vector<2x30xf32>
    %178 = math.exp %177 : vector<2x30xf32>
    %cst_38 = arith.constant 1.000000e+00 : f32
    %179 = vector.broadcast %cst_38 : f32 to vector<2x30xf32>
    %180 = arith.addf %179, %178 : vector<2x30xf32>
    %181 = arith.divf %179, %180 : vector<2x30xf32>
    %182 = vector.extract_strided_slice %164 {offsets = [0, 256], sizes = [2, 30], strides = [1, 1]} : vector<2x384xf32> to vector<2x30xf32>
    %183 = vector.extract_strided_slice %165 {offsets = [0, 256], sizes = [2, 30], strides = [1, 1]} : vector<2x384xf32> to vector<2x30xf32>
    %184 = vector.broadcast %7 : vector<1x30xf32> to vector<2x30xf32>
    %185 = arith.addf %183, %184 : vector<2x30xf32>
    %186 = arith.mulf %173, %185 : vector<2x30xf32>
    %187 = arith.addf %182, %186 : vector<2x30xf32>
    %188 = math.tanh %187 : vector<2x30xf32>
    %cst_39 = arith.constant 1.000000e+00 : f32
    %189 = vector.broadcast %cst_39 : f32 to vector<2x30xf32>
    %190 = arith.subf %189, %181 : vector<2x30xf32>
    %191 = arith.mulf %190, %188 : vector<2x30xf32>
    %192 = arith.mulf %181, %162 : vector<2x30xf32>
    %193 = arith.addf %191, %192 : vector<2x30xf32>
    %c10 = arith.constant 10 : index
    %c0_40 = arith.constant 0 : index
    %194 = vector.load %arg8[%c10, %c0_40] : memref<16x30xf32, #tpu.memory_space<vmem>>, vector<2x30xf32>
    tpu.vector_store %arg8[%c10, %c0_40], %193 {strides = array<i32>} : memref<16x30xf32, #tpu.memory_space<vmem>>, vector<2x30xf32>,
    %195 = vector.extract_strided_slice %5 {offsets = [12, 0], sizes = [2, 384], strides = [1, 1]} : vector<16x384xf32> to vector<2x384xf32>
    %cst_41 = arith.constant dense<0.000000e+00> : vector<2x384xf32>
    %196 = tpu.matmul %193, %6, %cst_41 {dimension_numbers = #tpu.dot_dimension_numbers<[1], [0], [0], [1], [0, 0, 1, 1], [], []>} : vector<2x30xf32>, vector<30x384xf32>, vector<2x384xf32> -> vector<2x384xf32>
    %197 = vector.extract_strided_slice %195 {offsets = [0, 0], sizes = [2, 30], strides = [1, 1]} : vector<2x384xf32> to vector<2x30xf32>
    %198 = vector.extract_strided_slice %196 {offsets = [0, 0], sizes = [2, 30], strides = [1, 1]} : vector<2x384xf32> to vector<2x30xf32>
    %199 = arith.addf %197, %198 : vector<2x30xf32>
    %200 = arith.negf %199 : vector<2x30xf32>
    %201 = math.exp %200 : vector<2x30xf32>
    %cst_42 = arith.constant 1.000000e+00 : f32
    %202 = vector.broadcast %cst_42 : f32 to vector<2x30xf32>
    %203 = arith.addf %202, %201 : vector<2x30xf32>
    %204 = arith.divf %202, %203 : vector<2x30xf32>
    %205 = vector.extract_strided_slice %195 {offsets = [0, 128], sizes = [2, 30], strides = [1, 1]} : vector<2x384xf32> to vector<2x30xf32>
    %206 = vector.extract_strided_slice %196 {offsets = [0, 128], sizes = [2, 30], strides = [1, 1]} : vector<2x384xf32> to vector<2x30xf32>
    %207 = arith.addf %205, %206 : vector<2x30xf32>
    %208 = arith.negf %207 : vector<2x30xf32>
    %209 = math.exp %208 : vector<2x30xf32>
    %cst_43 = arith.constant 1.000000e+00 : f32
    %210 = vector.broadcast %cst_43 : f32 to vector<2x30xf32>
    %211 = arith.addf %210, %209 : vector<2x30xf32>
    %212 = arith.divf %210, %211 : vector<2x30xf32>
    %213 = vector.extract_strided_slice %195 {offsets = [0, 256], sizes = [2, 30], strides = [1, 1]} : vector<2x384xf32> to vector<2x30xf32>
    %214 = vector.extract_strided_slice %196 {offsets = [0, 256], sizes = [2, 30], strides = [1, 1]} : vector<2x384xf32> to vector<2x30xf32>
    %215 = vector.broadcast %7 : vector<1x30xf32> to vector<2x30xf32>
    %216 = arith.addf %214, %215 : vector<2x30xf32>
    %217 = arith.mulf %204, %216 : vector<2x30xf32>
    %218 = arith.addf %213, %217 : vector<2x30xf32>
    %219 = math.tanh %218 : vector<2x30xf32>
    %cst_44 = arith.constant 1.000000e+00 : f32
    %220 = vector.broadcast %cst_44 : f32 to vector<2x30xf32>
    %221 = arith.subf %220, %212 : vector<2x30xf32>
    %222 = arith.mulf %221, %219 : vector<2x30xf32>
    %223 = arith.mulf %212, %193 : vector<2x30xf32>
    %224 = arith.addf %222, %223 : vector<2x30xf32>
    %c12 = arith.constant 12 : index
    %c0_45 = arith.constant 0 : index
    %225 = vector.load %arg8[%c12, %c0_45] : memref<16x30xf32, #tpu.memory_space<vmem>>, vector<2x30xf32>
    tpu.vector_store %arg8[%c12, %c0_45], %224 {strides = array<i32>} : memref<16x30xf32, #tpu.memory_space<vmem>>, vector<2x30xf32>,
    %226 = vector.extract_strided_slice %5 {offsets = [14, 0], sizes = [2, 384], strides = [1, 1]} : vector<16x384xf32> to vector<2x384xf32>
    %cst_46 = arith.constant dense<0.000000e+00> : vector<2x384xf32>
    %227 = tpu.matmul %224, %6, %cst_46 {dimension_numbers = #tpu.dot_dimension_numbers<[1], [0], [0], [1], [0, 0, 1, 1], [], []>} : vector<2x30xf32>, vector<30x384xf32>, vector<2x384xf32> -> vector<2x384xf32>
    %228 = vector.extract_strided_slice %226 {offsets = [0, 0], sizes = [2, 30], strides = [1, 1]} : vector<2x384xf32> to vector<2x30xf32>
    %229 = vector.extract_strided_slice %227 {offsets = [0, 0], sizes = [2, 30], strides = [1, 1]} : vector<2x384xf32> to vector<2x30xf32>
    %230 = arith.addf %228, %229 : vector<2x30xf32>
    %231 = arith.negf %230 : vector<2x30xf32>
    %232 = math.exp %231 : vector<2x30xf32>
    %cst_47 = arith.constant 1.000000e+00 : f32
    %233 = vector.broadcast %cst_47 : f32 to vector<2x30xf32>
    %234 = arith.addf %233, %232 : vector<2x30xf32>
    %235 = arith.divf %233, %234 : vector<2x30xf32>
    %236 = vector.extract_strided_slice %226 {offsets = [0, 128], sizes = [2, 30], strides = [1, 1]} : vector<2x384xf32> to vector<2x30xf32>
    %237 = vector.extract_strided_slice %227 {offsets = [0, 128], sizes = [2, 30], strides = [1, 1]} : vector<2x384xf32> to vector<2x30xf32>
    %238 = arith.addf %236, %237 : vector<2x30xf32>
    %239 = arith.negf %238 : vector<2x30xf32>
    %240 = math.exp %239 : vector<2x30xf32>
    %cst_48 = arith.constant 1.000000e+00 : f32
    %241 = vector.broadcast %cst_48 : f32 to vector<2x30xf32>
    %242 = arith.addf %241, %240 : vector<2x30xf32>
    %243 = arith.divf %241, %242 : vector<2x30xf32>
    %244 = vector.extract_strided_slice %226 {offsets = [0, 256], sizes = [2, 30], strides = [1, 1]} : vector<2x384xf32> to vector<2x30xf32>
    %245 = vector.extract_strided_slice %227 {offsets = [0, 256], sizes = [2, 30], strides = [1, 1]} : vector<2x384xf32> to vector<2x30xf32>
    %246 = vector.broadcast %7 : vector<1x30xf32> to vector<2x30xf32>
    %247 = arith.addf %245, %246 : vector<2x30xf32>
    %248 = arith.mulf %235, %247 : vector<2x30xf32>
    %249 = arith.addf %244, %248 : vector<2x30xf32>
    %250 = math.tanh %249 : vector<2x30xf32>
    %cst_49 = arith.constant 1.000000e+00 : f32
    %251 = vector.broadcast %cst_49 : f32 to vector<2x30xf32>
    %252 = arith.subf %251, %243 : vector<2x30xf32>
    %253 = arith.mulf %252, %250 : vector<2x30xf32>
    %254 = arith.mulf %243, %224 : vector<2x30xf32>
    %255 = arith.addf %253, %254 : vector<2x30xf32>
    %c14 = arith.constant 14 : index
    %c0_50 = arith.constant 0 : index
    %256 = vector.load %arg8[%c14, %c0_50] : memref<16x30xf32, #tpu.memory_space<vmem>>, vector<2x30xf32>
    tpu.vector_store %arg8[%c14, %c0_50], %255 {strides = array<i32>} : memref<16x30xf32, #tpu.memory_space<vmem>>, vector<2x30xf32>,
    %c0_51 = arith.constant 0 : index
    %c0_52 = arith.constant 0 : index
    %257 = vector.load %arg8[%c0_51, %c0_52] : memref<16x30xf32, #tpu.memory_space<vmem>>, vector<16x30xf32>
    %c0_53 = arith.constant 0 : index
    %c0_54 = arith.constant 0 : index
    %258 = vector.load %arg5[%c0_53, %c0_54] : memref<1x30xf32, #tpu.memory_space<vmem>>, vector<1x30xf32>
    %259 = vector.broadcast %258 : vector<1x30xf32> to vector<16x30xf32>
    %260 = arith.mulf %257, %259 : vector<16x30xf32>
    %cst_55 = arith.constant dense<0.000000e+00> : vector<16xf32>
    %261 = vector.multi_reduction <add>, %260, %cst_55 [1] : vector<16x30xf32> to vector<16xf32>
    %262 = vector.shape_cast %261 : vector<16xf32> to vector<16x1xf32>
    %c0_56 = arith.constant 0 : index
    %c0_57 = arith.constant 0 : index
    %263 = vector.load %arg6[%c0_56, %c0_57] : memref<1x1xf32, #tpu.memory_space<vmem>>, vector<1x1xf32>
    %264 = vector.broadcast %263 : vector<1x1xf32> to vector<16x1xf32>
    %265 = arith.addf %262, %264 : vector<16x1xf32>
    %c0_58 = arith.constant 0 : index
    %c0_59 = arith.constant 0 : index
    %266 = vector.load %arg7[%c0_58, %c0_59] : memref<16x1xf32, #tpu.memory_space<vmem>>, vector<16x1xf32>
    tpu.vector_store %arg7[%c0_58, %c0_59], %265 {strides = array<i32>} : memref<16x1xf32, #tpu.memory_space<vmem>>, vector<16x1xf32>,
    return
  }
}

</mosaic_0001>

<llo_original>
// kernel: tpu_custom_call.1
$region0: #{tpu_custom_call.1}
  #allocation0 [shape = 'u32[]', space=smem, size = 0x4, offset = 0x4, fixed_abs, tag = 'smem constant byte address 0x4 - core index']
  #allocation1 [shape = 'u32[144,128]{1,0:T(1,128)}', space=vmem, size = 0x12000, scoped, tag = 'internal scratch']
  #allocation2 [shape = 'f32[16,30]{1,0:T(8,128)}', space=vmem, size = 0x2000, scoped, tag = 'scratch operand']
  #allocation3 [shape = 'f32[1,1]{1,0:T(1,128)S(1)}', space=vmem, size = 0x200, scoped, tag = 'scoped memory for tpu_custom_call.1']
  %s0 = inlined_call_operand.hbm [shape: f32[16,20], index: 0, kind: input, shape index: {}]
  %s1 = inlined_call_operand.hbm [shape: f32[20,384], index: 1, kind: input, shape index: {}]
  %s2 = inlined_call_operand.hbm [shape: f32[30,384], index: 2, kind: input, shape index: {}]
  %s3 = inlined_call_operand.vmem [shape: f32[1,384], index: 3, kind: input, shape index: {}]
  %s4 = inlined_call_operand.vmem [shape: f32[1,30], index: 4, kind: input, shape index: {}]
  %s5 = inlined_call_operand.vmem [shape: f32[1,30], index: 5, kind: input, shape index: {}]
  %s6 = inlined_call_operand.<no memory space> [shape: f32[1,1], index: 6, kind: input, shape index: {}]
  %s7 = inlined_call_operand.vmem [shape: f32[16,1], index: 7, kind: output, shape index: {}]
  %s8 = sld [smem:[#allocation0]]
  $region50: #{tpu_custom_call.1} parent=0
    _
  %s10 = ssub.s32 1, %s8
  %s11 = scalar_select 0, %s10, %s8
  %v12 = vstv %s6
  %13 = vst [vmem:[#allocation3] sm:$0x1] %v12
  $region1: #{tpu_custom_call.1} parent=0
    #allocation4 [shape = 'u8[8192]{0}', space=vmem, size = 0x2000, scoped, tag = 'input window, operand 0, single buffered']
    #allocation5 [shape = 's32[1]{0}', space=sflag, size = 0x4, scoped, tag = 'scoped memory for tpu_custom_call.1']
    #allocation6 [shape = 'u8[36864]{0}', space=vmem, size = 0x9000, scoped, tag = 'input window, operand 1, single buffered']
    #allocation7 [shape = 's32[1]{0}', space=sflag, size = 0x4, scoped, tag = 'scoped memory for tpu_custom_call.1']
    #allocation8 [shape = 'u8[49152]{0}', space=vmem, size = 0xc000, scoped, tag = 'input window, operand 2, single buffered']
    %14 = vsyncpa [#allocation5], 0
    %15 = vsyncpa [#allocation7], 0
    // Predicated region
    $region2: #{tpu_custom_call.1} parent=1 // pred_check
      _
    $region3: #{tpu_custom_call.1} parent=1 // pred_check_branch
      %17 = sbr.rel (0) target = $region5
    $region4: #{tpu_custom_call.1} parent=1 // pred_region
      %s19 = ssub.s32 256, 256
      %20 = vsyncadd [#allocation5], %s19
      %s21 = sshll.u32 [#allocation4], 4
      %s22 = int_to_ptr.vmem [resolvable:$true] %s21
      %27 = dma.hbm_to_vmem [thread:$0]  %s0, 256, %s22, [#allocation5], 128, 128, 8
    $region5: #{tpu_custom_call.1} parent=1 // pred_fallthru
      _
    // Predicated region
    $region6: #{tpu_custom_call.1} parent=1 // pred_check
      _
    $region7: #{tpu_custom_call.1} parent=1 // pred_check_branch
      %29 = sbr.rel (0) target = $region9
    $region8: #{tpu_custom_call.1} parent=1 // pred_region
      %s31 = ssub.s32 1152, 1152
      %32 = vsyncadd [#allocation7], %s31
      %s33 = sshll.u32 [#allocation6], 4
      %s34 = int_to_ptr.vmem [resolvable:$true] %s33
      %39 = dma.hbm_to_vmem [thread:$0]  %s1, 1152, %s34, [#allocation7], 384, 384, 24
    $region9: #{tpu_custom_call.1} parent=1 // pred_fallthru
      _
    // Predicated region
    $region10: #{tpu_custom_call.1} parent=1 // pred_check
      _
    $region11: #{tpu_custom_call.1} parent=1 // pred_check_branch
      %41 = sbr.rel (0) target = $region13
    $region12: #{tpu_custom_call.1} parent=1 // pred_region
      %s43 = ssub.s32 1536, 1536
      %44 = vsyncadd [#allocation7], %s43
      %s45 = sshll.u32 [#allocation8], 4
      %s46 = int_to_ptr.vmem [resolvable:$true] %s45
      %51 = dma.hbm_to_vmem [thread:$0]  %s2, 1536, %s46, [#allocation7], 384, 384, 24
    $region13: #{tpu_custom_call.1} parent=1 // pred_fallthru
      _
    // Predicated region
    $region14: #{tpu_custom_call.1} parent=1 // pred_check
      _
    $region15: #{tpu_custom_call.1} parent=1 // pred_check_branch
      %53 = sbr.rel (0) target = $region17
    $region16: #{tpu_custom_call.1} parent=1 // pred_region
      _
    $region17: #{tpu_custom_call.1} parent=1 // pred_fallthru
      _
    // Predicated region
    $region18: #{tpu_custom_call.1} parent=1 // pred_check
      _
    $region19: #{tpu_custom_call.1} parent=1 // pred_check_branch
      %55 = sbr.rel (0) target = $region21
    $region20: #{tpu_custom_call.1} parent=1 // pred_region
      _
    $region21: #{tpu_custom_call.1} parent=1 // pred_fallthru
      _
    // Predicated region
    $region22: #{tpu_custom_call.1} parent=1 // pred_check
      _
    $region23: #{tpu_custom_call.1} parent=1 // pred_check_branch
      %57 = sbr.rel (0) target = $region25
    $region24: #{tpu_custom_call.1} parent=1 // pred_region
      _
    $region25: #{tpu_custom_call.1} parent=1 // pred_fallthru
      _
    // Predicated region
    $region26: #{tpu_custom_call.1} parent=1 // pred_check
      _
    $region27: #{tpu_custom_call.1} parent=1 // pred_check_branch
      %59 = sbr.rel (0) target = $region29
    $region28: #{tpu_custom_call.1} parent=1 // pred_region
      _
    $region29: #{tpu_custom_call.1} parent=1 // pred_fallthru
      _
    // Predicated region
    $region30: #{tpu_custom_call.1} parent=1 // pred_check
      _
    $region31: #{tpu_custom_call.1} parent=1 // pred_check_branch
      %61 = sbr.rel (0) target = $region33
    $region32: #{tpu_custom_call.1} parent=1 // pred_region
      %62 = dma.done [#allocation5], 256
    $region33: #{tpu_custom_call.1} parent=1 // pred_fallthru
      _
    // Predicated region
    $region34: #{tpu_custom_call.1} parent=1 // pred_check
      _
    $region35: #{tpu_custom_call.1} parent=1 // pred_check_branch
      %64 = sbr.rel (0) target = $region37
    $region36: #{tpu_custom_call.1} parent=1 // pred_region
      %65 = dma.done [#allocation7], 1152
    $region37: #{tpu_custom_call.1} parent=1 // pred_fallthru
      _
    // Predicated region
    $region38: #{tpu_custom_call.1} parent=1 // pred_check
      _
    $region39: #{tpu_custom_call.1} parent=1 // pred_check_branch
      %67 = sbr.rel (0) target = $region41
    $region40: #{tpu_custom_call.1} parent=1 // pred_region
      %68 = dma.done [#allocation7], 1536
    $region41: #{tpu_custom_call.1} parent=1 // pred_fallthru
      _
    %v69 = vld [vmem:[#allocation4] sm:$0xff]
    %v70 = vld [vmem:[#allocation4 + $0x8] sm:$0xff]
    %v71 = vld [vmem:[#allocation6] sm:$0xff]
    %v72 = vld [vmem:[#allocation6 + $0x8] sm:$0xff]
    %v73 = vld [vmem:[#allocation6 + $0x10] sm:$0xff]
    %v74 = vld [vmem:[#allocation6 + $0x18] sm:$0xff]
    %v75 = vld [vmem:[#allocation6 + $0x20] sm:$0xff]
    %v76 = vld [vmem:[#allocation6 + $0x28] sm:$0xff]
    %v77 = vld [vmem:[#allocation6 + $0x30] sm:$0xf]
    %v78 = vld [vmem:[#allocation6 + $0x38] sm:$0xf]
    %v79 = vld [vmem:[#allocation6 + $0x40] sm:$0xf]
    %v80 = vld [vmem:[%s3] sm:$0x7]
    %v82 = vlaneseq
    %v83 = vshrl.u32 %v82, 7
    %v84 = vsub.s32 0, %v83
    %v85 = vrot.slane %v80, %v84
    %v86 = vlaneseq
    %v87 = vshrl.u32 %v86, 7
    %v88 = vsub.s32 1, %v87
    %v89 = vrot.slane %v80, %v88
    %v90 = vlaneseq
    %v91 = vshrl.u32 %v90, 7
    %v92 = vsub.s32 2, %v91
    %v93 = vrot.slane %v80, %v92
    %vm97 = vcmask 162816
    %v99 = vsel %vm97, %v69, 0
    %v102 = vsel %vm97, %v70, 0
    %vm104 = vcmask 1043456
    %v106 = vsel %vm104, %v77, 0
    %v109 = vsel %vm104, %v78, 0
    %v112 = vsel %vm104, %v79, 0
    %114 = vmatprep.subr.mxu0 0.0
    %115 = vmatpush1.msra.mxu0 0.0
    %116 = vmatprep.subr.mxu0 0.0
    %117 = vmatpush1.msra.mxu0 0.0
    %118 = vmatprep.subr.mxu0 0.0
    %119 = vmatpush1.msra.mxu0 0.0
    %120 = vmatprep.subr.mxu0 0.0
    %121 = vmatpush1.msra.mxu0 0.0
    %122 = vmatprep.subr.mxu0 0.0
    %123 = vmatpush1.msra.mxu0 0.0
    %124 = vmatprep.subr.mxu0 0.0
    %125 = vmatpush1.msra.mxu0 0.0
    %126 = vmatprep.subr.mxu0 0.0
    %127 = vmatpush1.msra.mxu0 0.0
    %128 = vmatprep.subr.mxu0 0.0
    %129 = vmatpush1.msra.mxu0 0.0
    %130 = vmatprep.subr.mxu0 0.0
    %131 = vmatpush1.msra.mxu0 0.0
    %132 = vmatprep.subr.mxu0 0.0
    %133 = vmatpush1.msra.mxu0 0.0
    %134 = vmatprep.subr.mxu0 0.0
    %135 = vmatpush1.msra.mxu0 0.0
    %136 = vmatprep.subr.mxu0 0.0
    %137 = vmatpush1.msra.mxu0 0.0
    %138 = vmatprep.subr.mxu0 0.0
    %139 = vmatpush1.msra.mxu0 0.0
    %140 = vmatprep.subr.mxu0 %v109
    %141 = vmatpush1.msra.mxu0 %v106
    %142 = vmatprep.subr.mxu0 %v75
    %143 = vmatpush1.msra.mxu0 %v74
    %144 = vmatprep.subr.mxu0 %v72
    %145 = vmatpush1.msra.mxu0 %v71
    %146 = vmatprep.subr.mxu0 0.0
    %147 = vmatpush2.msra.mxu0 0.0
    %148 = vmatprep.subr.mxu0 0.0
    %149 = vmatpush2.msra.mxu0 0.0
    %150 = vmatprep.subr.mxu0 0.0
    %151 = vmatpush2.msra.mxu0 0.0
    %152 = vmatprep.subr.mxu0 0.0
    %153 = vmatpush2.msra.mxu0 0.0
    %154 = vmatprep.subr.mxu0 0.0
    %155 = vmatpush2.msra.mxu0 0.0
    %156 = vmatprep.subr.mxu0 0.0
    %157 = vmatpush2.msra.mxu0 0.0
    %158 = vmatprep.subr.mxu0 0.0
    %159 = vmatpush2.msra.mxu0 0.0
    %160 = vmatprep.subr.mxu0 0.0
    %161 = vmatpush2.msra.mxu0 0.0
    %162 = vmatprep.subr.mxu0 0.0
    %163 = vmatpush2.msra.mxu0 0.0
    %164 = vmatprep.subr.mxu0 0.0
    %165 = vmatpush2.msra.mxu0 0.0
    %166 = vmatprep.subr.mxu0 0.0
    %167 = vmatpush2.msra.mxu0 0.0
    %168 = vmatprep.subr.mxu0 0.0
    %169 = vmatpush2.msra.mxu0 0.0
    %170 = vmatprep.subr.mxu0 0.0
    %171 = vmatpush2.msra.mxu0 0.0
    %172 = vmatprep.subr.mxu0 0.0
    %173 = vmatpush2.msra.mxu0 0.0
    %174 = vmatprep.subr.mxu0 0.0
    %175 = vmatpush2.msra.mxu0 0.0
    %176 = vmatprep.subr.mxu0 0.0
    %177 = vmatpush2.msra.mxu0 0.0
    %178 = vmatprep.mubr.f32.mxu0 0.0
    %179 = vmatmul.mubr.f32.gmra.mxu0 %v99
    %v180 = vpop.f32.mrf.mxu0
    %v181 = vadd.f32 %v85, %v180
    %v182 = vpop.f32.mrf.mxu0
    %v183 = vadd.f32 %v89, %v182
    %184 = vmatprep.mubr.f32.mxu0 0.0
    %185 = vmatmul.mubr.f32.gmra.mxu0 %v102
    %v186 = vpop.f32.mrf.mxu0
    %v187 = vadd.f32 %v85, %v186
    %v188 = vpop.f32.mrf.mxu0
    %v189 = vadd.f32 %v89, %v188
    %190 = vdwg.mxu0
    %191 = vmatprep.subr.mxu0 0.0
    %192 = vmatpush1.msra.mxu0 0.0
    %193 = vmatprep.subr.mxu0 0.0
    %194 = vmatpush1.msra.mxu0 0.0
    %195 = vmatprep.subr.mxu0 0.0
    %196 = vmatpush1.msra.mxu0 0.0
    %197 = vmatprep.subr.mxu0 0.0
    %198 = vmatpush1.msra.mxu0 0.0
    %199 = vmatprep.subr.mxu0 0.0
    %200 = vmatpush1.msra.mxu0 0.0
    %201 = vmatprep.subr.mxu0 0.0
    %202 = vmatpush1.msra.mxu0 0.0
    %203 = vmatprep.subr.mxu0 0.0
    %204 = vmatpush1.msra.mxu0 0.0
    %205 = vmatprep.subr.mxu0 0.0
    %206 = vmatpush1.msra.mxu0 0.0
    %207 = vmatprep.subr.mxu0 0.0
    %208 = vmatpush1.msra.mxu0 0.0
    %209 = vmatprep.subr.mxu0 0.0
    %210 = vmatpush1.msra.mxu0 0.0
    %211 = vmatprep.subr.mxu0 0.0
    %212 = vmatpush1.msra.mxu0 0.0
    %213 = vmatprep.subr.mxu0 0.0
    %214 = vmatpush1.msra.mxu0 0.0
    %215 = vmatprep.subr.mxu0 0.0
    %216 = vmatpush1.msra.mxu0 0.0
    %217 = vmatprep.subr.mxu0 0.0
    %218 = vmatpush1.msra.mxu0 %v112
    %219 = vmatprep.subr.mxu0 0.0
    %220 = vmatpush1.msra.mxu0 %v76
    %221 = vmatprep.subr.mxu0 0.0
    %222 = vmatpush1.msra.mxu0 %v73
    %223 = vmatprep.subr.mxu0 0.0
    %224 = vmatpush2.msra.mxu0 0.0
    %225 = vmatprep.subr.mxu0 0.0
    %226 = vmatpush2.msra.mxu0 0.0
    %227 = vmatprep.subr.mxu0 0.0
    %228 = vmatpush2.msra.mxu0 0.0
    %229 = vmatprep.subr.mxu0 0.0
    %230 = vmatpush2.msra.mxu0 0.0
    %231 = vmatprep.subr.mxu0 0.0
    %232 = vmatpush2.msra.mxu0 0.0
    %233 = vmatprep.subr.mxu0 0.0
    %234 = vmatpush2.msra.mxu0 0.0
    %235 = vmatprep.subr.mxu0 0.0
    %236 = vmatpush2.msra.mxu0 0.0
    %237 = vmatprep.subr.mxu0 0.0
    %238 = vmatpush2.msra.mxu0 0.0
    %239 = vmatprep.subr.mxu0 0.0
    %240 = vmatpush2.msra.mxu0 0.0
    %241 = vmatprep.subr.mxu0 0.0
    %242 = vmatpush2.msra.mxu0 0.0
    %243 = vmatprep.subr.mxu0 0.0
    %244 = vmatpush2.msra.mxu0 0.0
    %245 = vmatprep.subr.mxu0 0.0
    %246 = vmatpush2.msra.mxu0 0.0
    %247 = vmatprep.subr.mxu0 0.0
    %248 = vmatpush2.msra.mxu0 0.0
    %249 = vmatprep.subr.mxu0 0.0
    %250 = vmatpush2.msra.mxu0 0.0
    %251 = vmatprep.subr.mxu0 0.0
    %252 = vmatpush2.msra.mxu0 0.0
    %253 = vmatprep.subr.mxu0 0.0
    %254 = vmatpush2.msra.mxu0 0.0
    %255 = vmatprep.mubr.f32.mxu0 0.0
    %256 = vmatmul.mubr.f32.gmra.mxu0 %v99
    %v257 = vpop.f32.mrf.mxu0
    %v258 = vadd.f32 %v93, %v257
    %v259 = vpop.f32.mrf.mxu0
    %260 = vmatprep.mubr.f32.mxu0 0.0
    %261 = vmatmul.mubr.f32.gmra.mxu0 %v102
    %v262 = vpop.f32.mrf.mxu0
    %v263 = vadd.f32 %v93, %v262
    %v264 = vpop.f32.mrf.mxu0
    %265 = vdwg.mxu0
    %v266 = vld [vmem:[#allocation8] sm:$0xff]
    %v267 = vld [vmem:[#allocation8 + $0x8] sm:$0xff]
    %v268 = vld [vmem:[#allocation8 + $0x10] sm:$0xff]
    %v269 = vld [vmem:[#allocation8 + $0x18] sm:$0xff]
    %v270 = vld [vmem:[#allocation8 + $0x20] sm:$0xff]
    %v271 = vld [vmem:[#allocation8 + $0x28] sm:$0xff]
    %v272 = vld [vmem:[#allocation8 + $0x30] sm:$0xff]
    %v273 = vld [vmem:[#allocation8 + $0x38] sm:$0xff]
    %v274 = vld [vmem:[#allocation8 + $0x40] sm:$0xff]
    %v275 = vld [vmem:[#allocation8 + $0x48] sm:$0x3f]
    %v276 = vld [vmem:[#allocation8 + $0x50] sm:$0x3f]
    %v277 = vld [vmem:[#allocation8 + $0x58] sm:$0x3f]
    %v278 = vld [vmem:[%s4] sm:$0x1]
    %vm279 = vcmask 244736
    %v281 = vsel %vm279, 0.0, 0
    %vm283 = vcmask 1045504
    %v285 = vsel %vm283, %v275, 0
    %v288 = vsel %vm283, %v276, 0
    %v291 = vsel %vm283, %v277, 0
    %293 = vmatprep.subr.mxu0 0.0
    %294 = vmatpush1.msra.mxu0 0.0
    %295 = vmatprep.subr.mxu0 0.0
    %296 = vmatpush1.msra.mxu0 0.0
    %297 = vmatprep.subr.mxu0 0.0
    %298 = vmatpush1.msra.mxu0 0.0
    %299 = vmatprep.subr.mxu0 0.0
    %300 = vmatpush1.msra.mxu0 0.0
    %301 = vmatprep.subr.mxu0 0.0
    %302 = vmatpush1.msra.mxu0 0.0
    %303 = vmatprep.subr.mxu0 0.0
    %304 = vmatpush1.msra.mxu0 0.0
    %305 = vmatprep.subr.mxu0 0.0
    %306 = vmatpush1.msra.mxu0 0.0
    %307 = vmatprep.subr.mxu0 0.0
    %308 = vmatpush1.msra.mxu0 0.0
    %309 = vmatprep.subr.mxu0 0.0
    %310 = vmatpush1.msra.mxu0 0.0
    %311 = vmatprep.subr.mxu0 0.0
    %312 = vmatpush1.msra.mxu0 0.0
    %313 = vmatprep.subr.mxu0 0.0
    %314 = vmatpush1.msra.mxu0 0.0
    %315 = vmatprep.subr.mxu0 0.0
    %316 = vmatpush1.msra.mxu0 0.0
    %317 = vmatprep.subr.mxu0 %v288
    %318 = vmatpush1.msra.mxu0 %v285
    %319 = vmatprep.subr.mxu0 %v273
    %320 = vmatpush1.msra.mxu0 %v272
    %321 = vmatprep.subr.mxu0 %v270
    %322 = vmatpush1.msra.mxu0 %v269
    %323 = vmatprep.subr.mxu0 %v267
    %324 = vmatpush1.msra.mxu0 %v266
    %325 = vmatprep.subr.mxu0 0.0
    %326 = vmatpush2.msra.mxu0 0.0
    %327 = vmatprep.subr.mxu0 0.0
    %328 = vmatpush2.msra.mxu0 0.0
    %329 = vmatprep.subr.mxu0 0.0
    %330 = vmatpush2.msra.mxu0 0.0
    %331 = vmatprep.subr.mxu0 0.0
    %332 = vmatpush2.msra.mxu0 0.0
    %333 = vmatprep.subr.mxu0 0.0
    %334 = vmatpush2.msra.mxu0 0.0
    %335 = vmatprep.subr.mxu0 0.0
    %336 = vmatpush2.msra.mxu0 0.0
    %337 = vmatprep.subr.mxu0 0.0
    %338 = vmatpush2.msra.mxu0 0.0
    %339 = vmatprep.subr.mxu0 0.0
    %340 = vmatpush2.msra.mxu0 0.0
    %341 = vmatprep.subr.mxu0 0.0
    %342 = vmatpush2.msra.mxu0 0.0
    %343 = vmatprep.subr.mxu0 0.0
    %344 = vmatpush2.msra.mxu0 0.0
    %345 = vmatprep.subr.mxu0 0.0
    %346 = vmatpush2.msra.mxu0 0.0
    %347 = vmatprep.subr.mxu0 0.0
    %348 = vmatpush2.msra.mxu0 0.0
    %349 = vmatprep.subr.mxu0 0.0
    %350 = vmatpush2.msra.mxu0 0.0
    %351 = vmatprep.subr.mxu0 0.0
    %352 = vmatpush2.msra.mxu0 0.0
    %353 = vmatprep.subr.mxu0 0.0
    %354 = vmatpush2.msra.mxu0 0.0
    %355 = vmatprep.subr.mxu0 0.0
    %356 = vmatpush2.msra.mxu0 0.0
    %357 = vmatprep.mubr.f32.mxu0 0.0
    %358 = vmatmul.mubr.f32.gmra.mxu0 %v281
    %v359 = vpop.f32.mrf.mxu0
    %v360 = vadd.f32 0.0, %v359
    %v361 = vpop.f32.mrf.mxu0
    %v362 = vadd.f32 0.0, %v361
    %363 = vdwg.mxu0
    %364 = vmatprep.subr.mxu0 0.0
    %365 = vmatpush1.msra.mxu0 0.0
    %366 = vmatprep.subr.mxu0 0.0
    %367 = vmatpush1.msra.mxu0 0.0
    %368 = vmatprep.subr.mxu0 0.0
    %369 = vmatpush1.msra.mxu0 0.0
    %370 = vmatprep.subr.mxu0 0.0
    %371 = vmatpush1.msra.mxu0 0.0
    %372 = vmatprep.subr.mxu0 0.0
    %373 = vmatpush1.msra.mxu0 0.0
    %374 = vmatprep.subr.mxu0 0.0
    %375 = vmatpush1.msra.mxu0 0.0
    %376 = vmatprep.subr.mxu0 0.0
    %377 = vmatpush1.msra.mxu0 0.0
    %378 = vmatprep.subr.mxu0 0.0
    %379 = vmatpush1.msra.mxu0 0.0
    %380 = vmatprep.subr.mxu0 0.0
    %381 = vmatpush1.msra.mxu0 0.0
    %382 = vmatprep.subr.mxu0 0.0
    %383 = vmatpush1.msra.mxu0 0.0
    %384 = vmatprep.subr.mxu0 0.0
    %385 = vmatpush1.msra.mxu0 0.0
    %386 = vmatprep.subr.mxu0 0.0
    %387 = vmatpush1.msra.mxu0 0.0
    %388 = vmatprep.subr.mxu0 0.0
    %389 = vmatpush1.msra.mxu0 %v291
    %390 = vmatprep.subr.mxu0 0.0
    %391 = vmatpush1.msra.mxu0 %v274
    %392 = vmatprep.subr.mxu0 0.0
    %393 = vmatpush1.msra.mxu0 %v271
    %394 = vmatprep.subr.mxu0 0.0
    %395 = vmatpush1.msra.mxu0 %v268
    %396 = vmatprep.subr.mxu0 0.0
    %397 = vmatpush2.msra.mxu0 0.0
    %398 = vmatprep.subr.mxu0 0.0
    %399 = vmatpush2.msra.mxu0 0.0
    %400 = vmatprep.subr.mxu0 0.0
    %401 = vmatpush2.msra.mxu0 0.0
    %402 = vmatprep.subr.mxu0 0.0
    %403 = vmatpush2.msra.mxu0 0.0
    %404 = vmatprep.subr.mxu0 0.0
    %405 = vmatpush2.msra.mxu0 0.0
    %406 = vmatprep.subr.mxu0 0.0
    %407 = vmatpush2.msra.mxu0 0.0
    %408 = vmatprep.subr.mxu0 0.0
    %409 = vmatpush2.msra.mxu0 0.0
    %410 = vmatprep.subr.mxu0 0.0
    %411 = vmatpush2.msra.mxu0 0.0
    %412 = vmatprep.subr.mxu0 0.0
    %413 = vmatpush2.msra.mxu0 0.0
    %414 = vmatprep.subr.mxu0 0.0
    %415 = vmatpush2.msra.mxu0 0.0
    %416 = vmatprep.subr.mxu0 0.0
    %417 = vmatpush2.msra.mxu0 0.0
    %418 = vmatprep.subr.mxu0 0.0
    %419 = vmatpush2.msra.mxu0 0.0
    %420 = vmatprep.subr.mxu0 0.0
    %421 = vmatpush2.msra.mxu0 0.0
    %422 = vmatprep.subr.mxu0 0.0
    %423 = vmatpush2.msra.mxu0 0.0
    %424 = vmatprep.subr.mxu0 0.0
    %425 = vmatpush2.msra.mxu0 0.0
    %426 = vmatprep.subr.mxu0 0.0
    %427 = vmatpush2.msra.mxu0 0.0
    %428 = vmatprep.mubr.f32.mxu0 0.0
    %429 = vmatmul.mubr.f32.gmra.mxu0 %v281
    %v430 = vpop.f32.mrf.mxu0
    %v431 = vadd.f32 0.0, %v430
    %v432 = vpop.f32.mrf.mxu0
    %433 = vdwg.mxu0
    %v434 = vadd.f32 %v181, %v360
    %v435 = vxor.u32 %v434, 2147483648
    %v436 = vmul.f32 %v435, 1.442695
    %v437 = vpow.pop %v436
    %v438 = vadd.f32 %v437, 1.0
    %v439 = vrcp.pop %v438
    %v440 = vmul.f32 1.0, %v439
    %v441 = vadd.f32 %v183, %v362
    %v442 = vxor.u32 %v441, 2147483648
    %v443 = vmul.f32 %v442, 1.442695
    %v444 = vpow.pop %v443
    %v445 = vadd.f32 %v444, 1.0
    %v446 = vrcp.pop %v445
    %v447 = vmul.f32 1.0, %v446
    %v449 = vlaneseq
    %v450 = vshrl.u32 %v449, 7
    %v451 = vsub.s32 0, %v450
    %v452 = vrot.slane %v278, %v451
    %v454 = vadd.f32 %v431, %v452
    %v455 = vmul.f32 %v440, %v454
    %v456 = vadd.f32 %v258, %v455
    %v457 = vtanh.pop %v456
    %v458 = vsub.f32 1.0, %v447
    %v459 = vmul.f32 %v458, %v457
    %v460 = vmul.f32 %v447, 0.0
    %v461 = vadd.f32 %v459, %v460
    %vm462 = vcmask 238592
    %463 = vst.msk [vmem:[#allocation2] sm:$0x3] %vm462, %v461
    %v465 = vsel %vm279, %v461, 0
    %467 = vmatprep.subr.mxu0 0.0
    %468 = vmatpush1.msra.mxu0 0.0
    %469 = vmatprep.subr.mxu0 0.0
    %470 = vmatpush1.msra.mxu0 0.0
    %471 = vmatprep.subr.mxu0 0.0
    %472 = vmatpush1.msra.mxu0 0.0
    %473 = vmatprep.subr.mxu0 0.0
    %474 = vmatpush1.msra.mxu0 0.0
    %475 = vmatprep.subr.mxu0 0.0
    %476 = vmatpush1.msra.mxu0 0.0
    %477 = vmatprep.subr.mxu0 0.0
    %478 = vmatpush1.msra.mxu0 0.0
    %479 = vmatprep.subr.mxu0 0.0
    %480 = vmatpush1.msra.mxu0 0.0
    %481 = vmatprep.subr.mxu0 0.0
    %482 = vmatpush1.msra.mxu0 0.0
    %483 = vmatprep.subr.mxu0 0.0
    %484 = vmatpush1.msra.mxu0 0.0
    %485 = vmatprep.subr.mxu0 0.0
    %486 = vmatpush1.msra.mxu0 0.0
    %487 = vmatprep.subr.mxu0 0.0
    %488 = vmatpush1.msra.mxu0 0.0
    %489 = vmatprep.subr.mxu0 0.0
    %490 = vmatpush1.msra.mxu0 0.0
    %491 = vmatprep.subr.mxu0 %v288
    %492 = vmatpush1.msra.mxu0 %v285
    %493 = vmatprep.subr.mxu0 %v273
    %494 = vmatpush1.msra.mxu0 %v272
    %495 = vmatprep.subr.mxu0 %v270
    %496 = vmatpush1.msra.mxu0 %v269
    %497 = vmatprep.subr.mxu0 %v267
    %498 = vmatpush1.msra.mxu0 %v266
    %499 = vmatprep.subr.mxu0 0.0
    %500 = vmatpush2.msra.mxu0 0.0
    %501 = vmatprep.subr.mxu0 0.0
    %502 = vmatpush2.msra.mxu0 0.0
    %503 = vmatprep.subr.mxu0 0.0
    %504 = vmatpush2.msra.mxu0 0.0
    %505 = vmatprep.subr.mxu0 0.0
    %506 = vmatpush2.msra.mxu0 0.0
    %507 = vmatprep.subr.mxu0 0.0
    %508 = vmatpush2.msra.mxu0 0.0
    %509 = vmatprep.subr.mxu0 0.0
    %510 = vmatpush2.msra.mxu0 0.0
    %511 = vmatprep.subr.mxu0 0.0
    %512 = vmatpush2.msra.mxu0 0.0
    %513 = vmatprep.subr.mxu0 0.0
    %514 = vmatpush2.msra.mxu0 0.0
    %515 = vmatprep.subr.mxu0 0.0
    %516 = vmatpush2.msra.mxu0 0.0
    %517 = vmatprep.subr.mxu0 0.0
    %518 = vmatpush2.msra.mxu0 0.0
    %519 = vmatprep.subr.mxu0 0.0
    %520 = vmatpush2.msra.mxu0 0.0
    %521 = vmatprep.subr.mxu0 0.0
    %522 = vmatpush2.msra.mxu0 0.0
    %523 = vmatprep.subr.mxu0 0.0
    %524 = vmatpush2.msra.mxu0 0.0
    %525 = vmatprep.subr.mxu0 0.0
    %526 = vmatpush2.msra.mxu0 0.0
    %527 = vmatprep.subr.mxu0 0.0
    %528 = vmatpush2.msra.mxu0 0.0
    %529 = vmatprep.subr.mxu0 0.0
    %530 = vmatpush2.msra.mxu0 0.0
    %531 = vmatprep.mubr.f32.mxu0 0.0
    %532 = vmatmul.mubr.f32.gmra.mxu0 %v465
    %v533 = vpop.f32.mrf.mxu0
    %v534 = vadd.f32 0.0, %v533
    %v535 = vpop.f32.mrf.mxu0
    %v536 = vadd.f32 0.0, %v535
    %537 = vdwg.mxu0
    %538 = vmatprep.subr.mxu0 0.0
    %539 = vmatpush1.msra.mxu0 0.0
    %540 = vmatprep.subr.mxu0 0.0
    %541 = vmatpush1.msra.mxu0 0.0
    %542 = vmatprep.subr.mxu0 0.0
    %543 = vmatpush1.msra.mxu0 0.0
    %544 = vmatprep.subr.mxu0 0.0
    %545 = vmatpush1.msra.mxu0 0.0
    %546 = vmatprep.subr.mxu0 0.0
    %547 = vmatpush1.msra.mxu0 0.0
    %548 = vmatprep.subr.mxu0 0.0
    %549 = vmatpush1.msra.mxu0 0.0
    %550 = vmatprep.subr.mxu0 0.0
    %551 = vmatpush1.msra.mxu0 0.0
    %552 = vmatprep.subr.mxu0 0.0
    %553 = vmatpush1.msra.mxu0 0.0
    %554 = vmatprep.subr.mxu0 0.0
    %555 = vmatpush1.msra.mxu0 0.0
    %556 = vmatprep.subr.mxu0 0.0
    %557 = vmatpush1.msra.mxu0 0.0
    %558 = vmatprep.subr.mxu0 0.0
    %559 = vmatpush1.msra.mxu0 0.0
    %560 = vmatprep.subr.mxu0 0.0
    %561 = vmatpush1.msra.mxu0 0.0
    %562 = vmatprep.subr.mxu0 0.0
    %563 = vmatpush1.msra.mxu0 %v291
    %564 = vmatprep.subr.mxu0 0.0
    %565 = vmatpush1.msra.mxu0 %v274
    %566 = vmatprep.subr.mxu0 0.0
    %567 = vmatpush1.msra.mxu0 %v271
    %568 = vmatprep.subr.mxu0 0.0
    %569 = vmatpush1.msra.mxu0 %v268
    %570 = vmatprep.subr.mxu0 0.0
    %571 = vmatpush2.msra.mxu0 0.0
    %572 = vmatprep.subr.mxu0 0.0
    %573 = vmatpush2.msra.mxu0 0.0
    %574 = vmatprep.subr.mxu0 0.0
    %575 = vmatpush2.msra.mxu0 0.0
    %576 = vmatprep.subr.mxu0 0.0
    %577 = vmatpush2.msra.mxu0 0.0
    %578 = vmatprep.subr.mxu0 0.0
    %579 = vmatpush2.msra.mxu0 0.0
    %580 = vmatprep.subr.mxu0 0.0
    %581 = vmatpush2.msra.mxu0 0.0
    %582 = vmatprep.subr.mxu0 0.0
    %583 = vmatpush2.msra.mxu0 0.0
    %584 = vmatprep.subr.mxu0 0.0
    %585 = vmatpush2.msra.mxu0 0.0
    %586 = vmatprep.subr.mxu0 0.0
    %587 = vmatpush2.msra.mxu0 0.0
    %588 = vmatprep.subr.mxu0 0.0
    %589 = vmatpush2.msra.mxu0 0.0
    %590 = vmatprep.subr.mxu0 0.0
    %591 = vmatpush2.msra.mxu0 0.0
    %592 = vmatprep.subr.mxu0 0.0
    %593 = vmatpush2.msra.mxu0 0.0
    %594 = vmatprep.subr.mxu0 0.0
    %595 = vmatpush2.msra.mxu0 0.0
    %596 = vmatprep.subr.mxu0 0.0
    %597 = vmatpush2.msra.mxu0 0.0
    %598 = vmatprep.subr.mxu0 0.0
    %599 = vmatpush2.msra.mxu0 0.0
    %600 = vmatprep.subr.mxu0 0.0
    %601 = vmatpush2.msra.mxu0 0.0
    %602 = vmatprep.mubr.f32.mxu0 0.0
    %603 = vmatmul.mubr.f32.gmra.mxu0 %v465
    %v604 = vpop.f32.mrf.mxu0
    %v605 = vadd.f32 0.0, %v604
    %v606 = vpop.f32.mrf.mxu0
    %607 = vdwg.mxu0
    %v609 = vrot.slane %v534, 6
    %v611 = vadd.f32 %v181, %v609
    %v612 = vxor.u32 %v611, 2147483648
    %v613 = vmul.f32 %v612, 1.442695
    %v614 = vpow.pop %v613
    %v615 = vadd.f32 %v614, 1.0
    %v616 = vrcp.pop %v615
    %v617 = vmul.f32 1.0, %v616
    %v619 = vrot.slane %v536, 6
    %v621 = vadd.f32 %v183, %v619
    %v622 = vxor.u32 %v621, 2147483648
    %v623 = vmul.f32 %v622, 1.442695
    %v624 = vpow.pop %v623
    %v625 = vadd.f32 %v624, 1.0
    %v626 = vrcp.pop %v625
    %v627 = vmul.f32 1.0, %v626
    %v628 = vadd.f32 %v605, %v452
    %v630 = vrot.slane %v628, 6
    %v632 = vmul.f32 %v617, %v630
    %v633 = vadd.f32 %v258, %v632
    %v634 = vtanh.pop %v633
    %v635 = vsub.f32 1.0, %v627
    %v636 = vmul.f32 %v635, %v634
    %v637 = vrot.slane %v461, 6
    %v639 = vmul.f32 %v627, %v637
    %v640 = vadd.f32 %v636, %v639
    %vm641 = vcmask 240642
    %642 = vst.msk [vmem:[#allocation2] sm:$0xc] %vm641, %v640
    %v644 = vrot.slane %v640, 2
    %v645 = vsel %vm279, %v644, 0
    %647 = vmatprep.subr.mxu0 0.0
    %648 = vmatpush1.msra.mxu0 0.0
    %649 = vmatprep.subr.mxu0 0.0
    %650 = vmatpush1.msra.mxu0 0.0
    %651 = vmatprep.subr.mxu0 0.0
    %652 = vmatpush1.msra.mxu0 0.0
    %653 = vmatprep.subr.mxu0 0.0
    %654 = vmatpush1.msra.mxu0 0.0
    %655 = vmatprep.subr.mxu0 0.0
    %656 = vmatpush1.msra.mxu0 0.0
    %657 = vmatprep.subr.mxu0 0.0
    %658 = vmatpush1.msra.mxu0 0.0
    %659 = vmatprep.subr.mxu0 0.0
    %660 = vmatpush1.msra.mxu0 0.0
    %661 = vmatprep.subr.mxu0 0.0
    %662 = vmatpush1.msra.mxu0 0.0
    %663 = vmatprep.subr.mxu0 0.0
    %664 = vmatpush1.msra.mxu0 0.0
    %665 = vmatprep.subr.mxu0 0.0
    %666 = vmatpush1.msra.mxu0 0.0
    %667 = vmatprep.subr.mxu0 0.0
    %668 = vmatpush1.msra.mxu0 0.0
    %669 = vmatprep.subr.mxu0 0.0
    %670 = vmatpush1.msra.mxu0 0.0
    %671 = vmatprep.subr.mxu0 %v288
    %672 = vmatpush1.msra.mxu0 %v285
    %673 = vmatprep.subr.mxu0 %v273
    %674 = vmatpush1.msra.mxu0 %v272
    %675 = vmatprep.subr.mxu0 %v270
    %676 = vmatpush1.msra.mxu0 %v269
    %677 = vmatprep.subr.mxu0 %v267
    %678 = vmatpush1.msra.mxu0 %v266
    %679 = vmatprep.subr.mxu0 0.0
    %680 = vmatpush2.msra.mxu0 0.0
    %681 = vmatprep.subr.mxu0 0.0
    %682 = vmatpush2.msra.mxu0 0.0
    %683 = vmatprep.subr.mxu0 0.0
    %684 = vmatpush2.msra.mxu0 0.0
    %685 = vmatprep.subr.mxu0 0.0
    %686 = vmatpush2.msra.mxu0 0.0
    %687 = vmatprep.subr.mxu0 0.0
    %688 = vmatpush2.msra.mxu0 0.0
    %689 = vmatprep.subr.mxu0 0.0
    %690 = vmatpush2.msra.mxu0 0.0
    %691 = vmatprep.subr.mxu0 0.0
    %692 = vmatpush2.msra.mxu0 0.0
    %693 = vmatprep.subr.mxu0 0.0
    %694 = vmatpush2.msra.mxu0 0.0
    %695 = vmatprep.subr.mxu0 0.0
    %696 = vmatpush2.msra.mxu0 0.0
    %697 = vmatprep.subr.mxu0 0.0
    %698 = vmatpush2.msra.mxu0 0.0
    %699 = vmatprep.subr.mxu0 0.0
    %700 = vmatpush2.msra.mxu0 0.0
    %701 = vmatprep.subr.mxu0 0.0
    %702 = vmatpush2.msra.mxu0 0.0
    %703 = vmatprep.subr.mxu0 0.0
    %704 = vmatpush2.msra.mxu0 0.0
    %705 = vmatprep.subr.mxu0 0.0
    %706 = vmatpush2.msra.mxu0 0.0
    %707 = vmatprep.subr.mxu0 0.0
    %708 = vmatpush2.msra.mxu0 0.0
    %709 = vmatprep.subr.mxu0 0.0
    %710 = vmatpush2.msra.mxu0 0.0
    %711 = vmatprep.mubr.f32.mxu0 0.0
    %712 = vmatmul.mubr.f32.gmra.mxu0 %v645
    %v713 = vpop.f32.mrf.mxu0
    %v714 = vadd.f32 0.0, %v713
    %v715 = vpop.f32.mrf.mxu0
    %v716 = vadd.f32 0.0, %v715
    %717 = vdwg.mxu0
    %718 = vmatprep.subr.mxu0 0.0
    %719 = vmatpush1.msra.mxu0 0.0
    %720 = vmatprep.subr.mxu0 0.0
    %721 = vmatpush1.msra.mxu0 0.0
    %722 = vmatprep.subr.mxu0 0.0
    %723 = vmatpush1.msra.mxu0 0.0
    %724 = vmatprep.subr.mxu0 0.0
    %725 = vmatpush1.msra.mxu0 0.0
    %726 = vmatprep.subr.mxu0 0.0
    %727 = vmatpush1.msra.mxu0 0.0
    %728 = vmatprep.subr.mxu0 0.0
    %729 = vmatpush1.msra.mxu0 0.0
    %730 = vmatprep.subr.mxu0 0.0
    %731 = vmatpush1.msra.mxu0 0.0
    %732 = vmatprep.subr.mxu0 0.0
    %733 = vmatpush1.msra.mxu0 0.0
    %734 = vmatprep.subr.mxu0 0.0
    %735 = vmatpush1.msra.mxu0 0.0
    %736 = vmatprep.subr.mxu0 0.0
    %737 = vmatpush1.msra.mxu0 0.0
    %738 = vmatprep.subr.mxu0 0.0
    %739 = vmatpush1.msra.mxu0 0.0
    %740 = vmatprep.subr.mxu0 0.0
    %741 = vmatpush1.msra.mxu0 0.0
    %742 = vmatprep.subr.mxu0 0.0
    %743 = vmatpush1.msra.mxu0 %v291
    %744 = vmatprep.subr.mxu0 0.0
    %745 = vmatpush1.msra.mxu0 %v274
    %746 = vmatprep.subr.mxu0 0.0
    %747 = vmatpush1.msra.mxu0 %v271
    %748 = vmatprep.subr.mxu0 0.0
    %749 = vmatpush1.msra.mxu0 %v268
    %750 = vmatprep.subr.mxu0 0.0
    %751 = vmatpush2.msra.mxu0 0.0
    %752 = vmatprep.subr.mxu0 0.0
    %753 = vmatpush2.msra.mxu0 0.0
    %754 = vmatprep.subr.mxu0 0.0
    %755 = vmatpush2.msra.mxu0 0.0
    %756 = vmatprep.subr.mxu0 0.0
    %757 = vmatpush2.msra.mxu0 0.0
    %758 = vmatprep.subr.mxu0 0.0
    %759 = vmatpush2.msra.mxu0 0.0
    %760 = vmatprep.subr.mxu0 0.0
    %761 = vmatpush2.msra.mxu0 0.0
    %762 = vmatprep.subr.mxu0 0.0
    %763 = vmatpush2.msra.mxu0 0.0
    %764 = vmatprep.subr.mxu0 0.0
    %765 = vmatpush2.msra.mxu0 0.0
    %766 = vmatprep.subr.mxu0 0.0
    %767 = vmatpush2.msra.mxu0 0.0
    %768 = vmatprep.subr.mxu0 0.0
    %769 = vmatpush2.msra.mxu0 0.0
    %770 = vmatprep.subr.mxu0 0.0
    %771 = vmatpush2.msra.mxu0 0.0
    %772 = vmatprep.subr.mxu0 0.0
    %773 = vmatpush2.msra.mxu0 0.0
    %774 = vmatprep.subr.mxu0 0.0
    %775 = vmatpush2.msra.mxu0 0.0
    %776 = vmatprep.subr.mxu0 0.0
    %777 = vmatpush2.msra.mxu0 0.0
    %778 = vmatprep.subr.mxu0 0.0
    %779 = vmatpush2.msra.mxu0 0.0
    %780 = vmatprep.subr.mxu0 0.0
    %781 = vmatpush2.msra.mxu0 0.0
    %782 = vmatprep.mubr.f32.mxu0 0.0
    %783 = vmatmul.mubr.f32.gmra.mxu0 %v645
    %v784 = vpop.f32.mrf.mxu0
    %v785 = vadd.f32 0.0, %v784
    %v786 = vpop.f32.mrf.mxu0
    %787 = vdwg.mxu0
    %v789 = vrot.slane %v714, 4
    %v791 = vadd.f32 %v181, %v789
    %v792 = vxor.u32 %v791, 2147483648
    %v793 = vmul.f32 %v792, 1.442695
    %v794 = vpow.pop %v793
    %v795 = vadd.f32 %v794, 1.0
    %v796 = vrcp.pop %v795
    %v797 = vmul.f32 1.0, %v796
    %v799 = vrot.slane %v716, 4
    %v801 = vadd.f32 %v183, %v799
    %v802 = vxor.u32 %v801, 2147483648
    %v803 = vmul.f32 %v802, 1.442695
    %v804 = vpow.pop %v803
    %v805 = vadd.f32 %v804, 1.0
    %v806 = vrcp.pop %v805
    %v807 = vmul.f32 1.0, %v806
    %v808 = vadd.f32 %v785, %v452
    %v810 = vrot.slane %v808, 4
    %v812 = vmul.f32 %v797, %v810
    %v813 = vadd.f32 %v258, %v812
    %v814 = vtanh.pop %v813
    %v815 = vsub.f32 1.0, %v807
    %v816 = vmul.f32 %v815, %v814
    %v817 = vrot.slane %v640, 6
    %v819 = vmul.f32 %v807, %v817
    %v820 = vadd.f32 %v816, %v819
    %vm821 = vcmask 242692
    %822 = vst.msk [vmem:[#allocation2] sm:$0x30] %vm821, %v820
    %v824 = vrot.slane %v820, 4
    %v825 = vsel %vm279, %v824, 0
    %827 = vmatprep.subr.mxu0 0.0
    %828 = vmatpush1.msra.mxu0 0.0
    %829 = vmatprep.subr.mxu0 0.0
    %830 = vmatpush1.msra.mxu0 0.0
    %831 = vmatprep.subr.mxu0 0.0
    %832 = vmatpush1.msra.mxu0 0.0
    %833 = vmatprep.subr.mxu0 0.0
    %834 = vmatpush1.msra.mxu0 0.0
    %835 = vmatprep.subr.mxu0 0.0
    %836 = vmatpush1.msra.mxu0 0.0
    %837 = vmatprep.subr.mxu0 0.0
    %838 = vmatpush1.msra.mxu0 0.0
    %839 = vmatprep.subr.mxu0 0.0
    %840 = vmatpush1.msra.mxu0 0.0
    %841 = vmatprep.subr.mxu0 0.0
    %842 = vmatpush1.msra.mxu0 0.0
    %843 = vmatprep.subr.mxu0 0.0
    %844 = vmatpush1.msra.mxu0 0.0
    %845 = vmatprep.subr.mxu0 0.0
    %846 = vmatpush1.msra.mxu0 0.0
    %847 = vmatprep.subr.mxu0 0.0
    %848 = vmatpush1.msra.mxu0 0.0
    %849 = vmatprep.subr.mxu0 0.0
    %850 = vmatpush1.msra.mxu0 0.0
    %851 = vmatprep.subr.mxu0 %v288
    %852 = vmatpush1.msra.mxu0 %v285
    %853 = vmatprep.subr.mxu0 %v273
    %854 = vmatpush1.msra.mxu0 %v272
    %855 = vmatprep.subr.mxu0 %v270
    %856 = vmatpush1.msra.mxu0 %v269
    %857 = vmatprep.subr.mxu0 %v267
    %858 = vmatpush1.msra.mxu0 %v266
    %859 = vmatprep.subr.mxu0 0.0
    %860 = vmatpush2.msra.mxu0 0.0
    %861 = vmatprep.subr.mxu0 0.0
    %862 = vmatpush2.msra.mxu0 0.0
    %863 = vmatprep.subr.mxu0 0.0
    %864 = vmatpush2.msra.mxu0 0.0
    %865 = vmatprep.subr.mxu0 0.0
    %866 = vmatpush2.msra.mxu0 0.0
    %867 = vmatprep.subr.mxu0 0.0
    %868 = vmatpush2.msra.mxu0 0.0
    %869 = vmatprep.subr.mxu0 0.0
    %870 = vmatpush2.msra.mxu0 0.0
    %871 = vmatprep.subr.mxu0 0.0
    %872 = vmatpush2.msra.mxu0 0.0
    %873 = vmatprep.subr.mxu0 0.0
    %874 = vmatpush2.msra.mxu0 0.0
    %875 = vmatprep.subr.mxu0 0.0
    %876 = vmatpush2.msra.mxu0 0.0
    %877 = vmatprep.subr.mxu0 0.0
    %878 = vmatpush2.msra.mxu0 0.0
    %879 = vmatprep.subr.mxu0 0.0
    %880 = vmatpush2.msra.mxu0 0.0
    %881 = vmatprep.subr.mxu0 0.0
    %882 = vmatpush2.msra.mxu0 0.0
    %883 = vmatprep.subr.mxu0 0.0
    %884 = vmatpush2.msra.mxu0 0.0
    %885 = vmatprep.subr.mxu0 0.0
    %886 = vmatpush2.msra.mxu0 0.0
    %887 = vmatprep.subr.mxu0 0.0
    %888 = vmatpush2.msra.mxu0 0.0
    %889 = vmatprep.subr.mxu0 0.0
    %890 = vmatpush2.msra.mxu0 0.0
    %891 = vmatprep.mubr.f32.mxu0 0.0
    %892 = vmatmul.mubr.f32.gmra.mxu0 %v825
    %v893 = vpop.f32.mrf.mxu0
    %v894 = vadd.f32 0.0, %v893
    %v895 = vpop.f32.mrf.mxu0
    %v896 = vadd.f32 0.0, %v895
    %897 = vdwg.mxu0
    %898 = vmatprep.subr.mxu0 0.0
    %899 = vmatpush1.msra.mxu0 0.0
    %900 = vmatprep.subr.mxu0 0.0
    %901 = vmatpush1.msra.mxu0 0.0
    %902 = vmatprep.subr.mxu0 0.0
    %903 = vmatpush1.msra.mxu0 0.0
    %904 = vmatprep.subr.mxu0 0.0
    %905 = vmatpush1.msra.mxu0 0.0
    %906 = vmatprep.subr.mxu0 0.0
    %907 = vmatpush1.msra.mxu0 0.0
    %908 = vmatprep.subr.mxu0 0.0
    %909 = vmatpush1.msra.mxu0 0.0
    %910 = vmatprep.subr.mxu0 0.0
    %911 = vmatpush1.msra.mxu0 0.0
    %912 = vmatprep.subr.mxu0 0.0
    %913 = vmatpush1.msra.mxu0 0.0
    %914 = vmatprep.subr.mxu0 0.0
    %915 = vmatpush1.msra.mxu0 0.0
    %916 = vmatprep.subr.mxu0 0.0
    %917 = vmatpush1.msra.mxu0 0.0
    %918 = vmatprep.subr.mxu0 0.0
    %919 = vmatpush1.msra.mxu0 0.0
    %920 = vmatprep.subr.mxu0 0.0
    %921 = vmatpush1.msra.mxu0 0.0
    %922 = vmatprep.subr.mxu0 0.0
    %923 = vmatpush1.msra.mxu0 %v291
    %924 = vmatprep.subr.mxu0 0.0
    %925 = vmatpush1.msra.mxu0 %v274
    %926 = vmatprep.subr.mxu0 0.0
    %927 = vmatpush1.msra.mxu0 %v271
    %928 = vmatprep.subr.mxu0 0.0
    %929 = vmatpush1.msra.mxu0 %v268
    %930 = vmatprep.subr.mxu0 0.0
    %931 = vmatpush2.msra.mxu0 0.0
    %932 = vmatprep.subr.mxu0 0.0
    %933 = vmatpush2.msra.mxu0 0.0
    %934 = vmatprep.subr.mxu0 0.0
    %935 = vmatpush2.msra.mxu0 0.0
    %936 = vmatprep.subr.mxu0 0.0
    %937 = vmatpush2.msra.mxu0 0.0
    %938 = vmatprep.subr.mxu0 0.0
    %939 = vmatpush2.msra.mxu0 0.0
    %940 = vmatprep.subr.mxu0 0.0
    %941 = vmatpush2.msra.mxu0 0.0
    %942 = vmatprep.subr.mxu0 0.0
    %943 = vmatpush2.msra.mxu0 0.0
    %944 = vmatprep.subr.mxu0 0.0
    %945 = vmatpush2.msra.mxu0 0.0
    %946 = vmatprep.subr.mxu0 0.0
    %947 = vmatpush2.msra.mxu0 0.0
    %948 = vmatprep.subr.mxu0 0.0
    %949 = vmatpush2.msra.mxu0 0.0
    %950 = vmatprep.subr.mxu0 0.0
    %951 = vmatpush2.msra.mxu0 0.0
    %952 = vmatprep.subr.mxu0 0.0
    %953 = vmatpush2.msra.mxu0 0.0
    %954 = vmatprep.subr.mxu0 0.0
    %955 = vmatpush2.msra.mxu0 0.0
    %956 = vmatprep.subr.mxu0 0.0
    %957 = vmatpush2.msra.mxu0 0.0
    %958 = vmatprep.subr.mxu0 0.0
    %959 = vmatpush2.msra.mxu0 0.0
    %960 = vmatprep.subr.mxu0 0.0
    %961 = vmatpush2.msra.mxu0 0.0
    %962 = vmatprep.mubr.f32.mxu0 0.0
    %963 = vmatmul.mubr.f32.gmra.mxu0 %v825
    %v964 = vpop.f32.mrf.mxu0
    %v965 = vadd.f32 0.0, %v964
    %v966 = vpop.f32.mrf.mxu0
    %967 = vdwg.mxu0
    %v969 = vrot.slane %v894, 2
    %v971 = vadd.f32 %v181, %v969
    %v972 = vxor.u32 %v971, 2147483648
    %v973 = vmul.f32 %v972, 1.442695
    %v974 = vpow.pop %v973
    %v975 = vadd.f32 %v974, 1.0
    %v976 = vrcp.pop %v975
    %v977 = vmul.f32 1.0, %v976
    %v979 = vrot.slane %v896, 2
    %v981 = vadd.f32 %v183, %v979
    %v982 = vxor.u32 %v981, 2147483648
    %v983 = vmul.f32 %v982, 1.442695
    %v984 = vpow.pop %v983
    %v985 = vadd.f32 %v984, 1.0
    %v986 = vrcp.pop %v985
    %v987 = vmul.f32 1.0, %v986
    %v988 = vadd.f32 %v965, %v452
    %v990 = vrot.slane %v988, 2
    %v992 = vmul.f32 %v977, %v990
    %v993 = vadd.f32 %v258, %v992
    %v994 = vtanh.pop %v993
    %v995 = vsub.f32 1.0, %v987
    %v996 = vmul.f32 %v995, %v994
    %v997 = vrot.slane %v820, 6
    %v999 = vmul.f32 %v987, %v997
    %v1000 = vadd.f32 %v996, %v999
    %vm1001 = vcmask 244742
    %1002 = vst.msk [vmem:[#allocation2] sm:$0xc0] %vm1001, %v1000
    %v1004 = vrot.slane %v1000, 6
    %v1005 = vsel %vm279, %v1004, 0
    %1007 = vmatprep.subr.mxu0 0.0
    %1008 = vmatpush1.msra.mxu0 0.0
    %1009 = vmatprep.subr.mxu0 0.0
    %1010 = vmatpush1.msra.mxu0 0.0
    %1011 = vmatprep.subr.mxu0 0.0
    %1012 = vmatpush1.msra.mxu0 0.0
    %1013 = vmatprep.subr.mxu0 0.0
    %1014 = vmatpush1.msra.mxu0 0.0
    %1015 = vmatprep.subr.mxu0 0.0
    %1016 = vmatpush1.msra.mxu0 0.0
    %1017 = vmatprep.subr.mxu0 0.0
    %1018 = vmatpush1.msra.mxu0 0.0
    %1019 = vmatprep.subr.mxu0 0.0
    %1020 = vmatpush1.msra.mxu0 0.0
    %1021 = vmatprep.subr.mxu0 0.0
    %1022 = vmatpush1.msra.mxu0 0.0
    %1023 = vmatprep.subr.mxu0 0.0
    %1024 = vmatpush1.msra.mxu0 0.0
    %1025 = vmatprep.subr.mxu0 0.0
    %1026 = vmatpush1.msra.mxu0 0.0
    %1027 = vmatprep.subr.mxu0 0.0
    %1028 = vmatpush1.msra.mxu0 0.0
    %1029 = vmatprep.subr.mxu0 0.0
    %1030 = vmatpush1.msra.mxu0 0.0
    %1031 = vmatprep.subr.mxu0 %v288
    %1032 = vmatpush1.msra.mxu0 %v285
    %1033 = vmatprep.subr.mxu0 %v273
    %1034 = vmatpush1.msra.mxu0 %v272
    %1035 = vmatprep.subr.mxu0 %v270
    %1036 = vmatpush1.msra.mxu0 %v269
    %1037 = vmatprep.subr.mxu0 %v267
    %1038 = vmatpush1.msra.mxu0 %v266
    %1039 = vmatprep.subr.mxu0 0.0
    %1040 = vmatpush2.msra.mxu0 0.0
    %1041 = vmatprep.subr.mxu0 0.0
    %1042 = vmatpush2.msra.mxu0 0.0
    %1043 = vmatprep.subr.mxu0 0.0
    %1044 = vmatpush2.msra.mxu0 0.0
    %1045 = vmatprep.subr.mxu0 0.0
    %1046 = vmatpush2.msra.mxu0 0.0
    %1047 = vmatprep.subr.mxu0 0.0
    %1048 = vmatpush2.msra.mxu0 0.0
    %1049 = vmatprep.subr.mxu0 0.0
    %1050 = vmatpush2.msra.mxu0 0.0
    %1051 = vmatprep.subr.mxu0 0.0
    %1052 = vmatpush2.msra.mxu0 0.0
    %1053 = vmatprep.subr.mxu0 0.0
    %1054 = vmatpush2.msra.mxu0 0.0
    %1055 = vmatprep.subr.mxu0 0.0
    %1056 = vmatpush2.msra.mxu0 0.0
    %1057 = vmatprep.subr.mxu0 0.0
    %1058 = vmatpush2.msra.mxu0 0.0
    %1059 = vmatprep.subr.mxu0 0.0
    %1060 = vmatpush2.msra.mxu0 0.0
    %1061 = vmatprep.subr.mxu0 0.0
    %1062 = vmatpush2.msra.mxu0 0.0
    %1063 = vmatprep.subr.mxu0 0.0
    %1064 = vmatpush2.msra.mxu0 0.0
    %1065 = vmatprep.subr.mxu0 0.0
    %1066 = vmatpush2.msra.mxu0 0.0
    %1067 = vmatprep.subr.mxu0 0.0
    %1068 = vmatpush2.msra.mxu0 0.0
    %1069 = vmatprep.subr.mxu0 0.0
    %1070 = vmatpush2.msra.mxu0 0.0
    %1071 = vmatprep.mubr.f32.mxu0 0.0
    %1072 = vmatmul.mubr.f32.gmra.mxu0 %v1005
    %v1073 = vpop.f32.mrf.mxu0
    %v1074 = vadd.f32 0.0, %v1073
    %v1075 = vpop.f32.mrf.mxu0
    %v1076 = vadd.f32 0.0, %v1075
    %1077 = vdwg.mxu0
    %1078 = vmatprep.subr.mxu0 0.0
    %1079 = vmatpush1.msra.mxu0 0.0
    %1080 = vmatprep.subr.mxu0 0.0
    %1081 = vmatpush1.msra.mxu0 0.0
    %1082 = vmatprep.subr.mxu0 0.0
    %1083 = vmatpush1.msra.mxu0 0.0
    %1084 = vmatprep.subr.mxu0 0.0
    %1085 = vmatpush1.msra.mxu0 0.0
    %1086 = vmatprep.subr.mxu0 0.0
    %1087 = vmatpush1.msra.mxu0 0.0
    %1088 = vmatprep.subr.mxu0 0.0
    %1089 = vmatpush1.msra.mxu0 0.0
    %1090 = vmatprep.subr.mxu0 0.0
    %1091 = vmatpush1.msra.mxu0 0.0
    %1092 = vmatprep.subr.mxu0 0.0
    %1093 = vmatpush1.msra.mxu0 0.0
    %1094 = vmatprep.subr.mxu0 0.0
    %1095 = vmatpush1.msra.mxu0 0.0
    %1096 = vmatprep.subr.mxu0 0.0
    %1097 = vmatpush1.msra.mxu0 0.0
    %1098 = vmatprep.subr.mxu0 0.0
    %1099 = vmatpush1.msra.mxu0 0.0
    %1100 = vmatprep.subr.mxu0 0.0
    %1101 = vmatpush1.msra.mxu0 0.0
    %1102 = vmatprep.subr.mxu0 0.0
    %1103 = vmatpush1.msra.mxu0 %v291
    %1104 = vmatprep.subr.mxu0 0.0
    %1105 = vmatpush1.msra.mxu0 %v274
    %1106 = vmatprep.subr.mxu0 0.0
    %1107 = vmatpush1.msra.mxu0 %v271
    %1108 = vmatprep.subr.mxu0 0.0
    %1109 = vmatpush1.msra.mxu0 %v268
    %1110 = vmatprep.subr.mxu0 0.0
    %1111 = vmatpush2.msra.mxu0 0.0
    %1112 = vmatprep.subr.mxu0 0.0
    %1113 = vmatpush2.msra.mxu0 0.0
    %1114 = vmatprep.subr.mxu0 0.0
    %1115 = vmatpush2.msra.mxu0 0.0
    %1116 = vmatprep.subr.mxu0 0.0
    %1117 = vmatpush2.msra.mxu0 0.0
    %1118 = vmatprep.subr.mxu0 0.0
    %1119 = vmatpush2.msra.mxu0 0.0
    %1120 = vmatprep.subr.mxu0 0.0
    %1121 = vmatpush2.msra.mxu0 0.0
    %1122 = vmatprep.subr.mxu0 0.0
    %1123 = vmatpush2.msra.mxu0 0.0
    %1124 = vmatprep.subr.mxu0 0.0
    %1125 = vmatpush2.msra.mxu0 0.0
    %1126 = vmatprep.subr.mxu0 0.0
    %1127 = vmatpush2.msra.mxu0 0.0
    %1128 = vmatprep.subr.mxu0 0.0
    %1129 = vmatpush2.msra.mxu0 0.0
    %1130 = vmatprep.subr.mxu0 0.0
    %1131 = vmatpush2.msra.mxu0 0.0
    %1132 = vmatprep.subr.mxu0 0.0
    %1133 = vmatpush2.msra.mxu0 0.0
    %1134 = vmatprep.subr.mxu0 0.0
    %1135 = vmatpush2.msra.mxu0 0.0
    %1136 = vmatprep.subr.mxu0 0.0
    %1137 = vmatpush2.msra.mxu0 0.0
    %1138 = vmatprep.subr.mxu0 0.0
    %1139 = vmatpush2.msra.mxu0 0.0
    %1140 = vmatprep.subr.mxu0 0.0
    %1141 = vmatpush2.msra.mxu0 0.0
    %1142 = vmatprep.mubr.f32.mxu0 0.0
    %1143 = vmatmul.mubr.f32.gmra.mxu0 %v1005
    %v1144 = vpop.f32.mrf.mxu0
    %v1145 = vadd.f32 0.0, %v1144
    %v1146 = vpop.f32.mrf.mxu0
    %1147 = vdwg.mxu0
    %v1148 = vadd.f32 %v187, %v1074
    %v1149 = vxor.u32 %v1148, 2147483648
    %v1150 = vmul.f32 %v1149, 1.442695
    %v1151 = vpow.pop %v1150
    %v1152 = vadd.f32 %v1151, 1.0
    %v1153 = vrcp.pop %v1152
    %v1154 = vmul.f32 1.0, %v1153
    %v1155 = vadd.f32 %v189, %v1076
    %v1156 = vxor.u32 %v1155, 2147483648
    %v1157 = vmul.f32 %v1156, 1.442695
    %v1158 = vpow.pop %v1157
    %v1159 = vadd.f32 %v1158, 1.0
    %v1160 = vrcp.pop %v1159
    %v1161 = vmul.f32 1.0, %v1160
    %v1162 = vadd.f32 %v1145, %v452
    %v1163 = vmul.f32 %v1154, %v1162
    %v1164 = vadd.f32 %v263, %v1163
    %v1165 = vtanh.pop %v1164
    %v1166 = vsub.f32 1.0, %v1161
    %v1167 = vmul.f32 %v1166, %v1165
    %v1169 = vmul.f32 %v1161, %v1004
    %v1170 = vadd.f32 %v1167, %v1169
    %1171 = vst.msk [vmem:[#allocation2 + $0x8] sm:$0x3] %vm462, %v1170
    %v1173 = vsel %vm279, %v1170, 0
    %1175 = vmatprep.subr.mxu0 0.0
    %1176 = vmatpush1.msra.mxu0 0.0
    %1177 = vmatprep.subr.mxu0 0.0
    %1178 = vmatpush1.msra.mxu0 0.0
    %1179 = vmatprep.subr.mxu0 0.0
    %1180 = vmatpush1.msra.mxu0 0.0
    %1181 = vmatprep.subr.mxu0 0.0
    %1182 = vmatpush1.msra.mxu0 0.0
    %1183 = vmatprep.subr.mxu0 0.0
    %1184 = vmatpush1.msra.mxu0 0.0
    %1185 = vmatprep.subr.mxu0 0.0
    %1186 = vmatpush1.msra.mxu0 0.0
    %1187 = vmatprep.subr.mxu0 0.0
    %1188 = vmatpush1.msra.mxu0 0.0
    %1189 = vmatprep.subr.mxu0 0.0
    %1190 = vmatpush1.msra.mxu0 0.0
    %1191 = vmatprep.subr.mxu0 0.0
    %1192 = vmatpush1.msra.mxu0 0.0
    %1193 = vmatprep.subr.mxu0 0.0
    %1194 = vmatpush1.msra.mxu0 0.0
    %1195 = vmatprep.subr.mxu0 0.0
    %1196 = vmatpush1.msra.mxu0 0.0
    %1197 = vmatprep.subr.mxu0 0.0
    %1198 = vmatpush1.msra.mxu0 0.0
    %1199 = vmatprep.subr.mxu0 %v288
    %1200 = vmatpush1.msra.mxu0 %v285
    %1201 = vmatprep.subr.mxu0 %v273
    %1202 = vmatpush1.msra.mxu0 %v272
    %1203 = vmatprep.subr.mxu0 %v270
    %1204 = vmatpush1.msra.mxu0 %v269
    %1205 = vmatprep.subr.mxu0 %v267
    %1206 = vmatpush1.msra.mxu0 %v266
    %1207 = vmatprep.subr.mxu0 0.0
    %1208 = vmatpush2.msra.mxu0 0.0
    %1209 = vmatprep.subr.mxu0 0.0
    %1210 = vmatpush2.msra.mxu0 0.0
    %1211 = vmatprep.subr.mxu0 0.0
    %1212 = vmatpush2.msra.mxu0 0.0
    %1213 = vmatprep.subr.mxu0 0.0
    %1214 = vmatpush2.msra.mxu0 0.0
    %1215 = vmatprep.subr.mxu0 0.0
    %1216 = vmatpush2.msra.mxu0 0.0
    %1217 = vmatprep.subr.mxu0 0.0
    %1218 = vmatpush2.msra.mxu0 0.0
    %1219 = vmatprep.subr.mxu0 0.0
    %1220 = vmatpush2.msra.mxu0 0.0
    %1221 = vmatprep.subr.mxu0 0.0
    %1222 = vmatpush2.msra.mxu0 0.0
    %1223 = vmatprep.subr.mxu0 0.0
    %1224 = vmatpush2.msra.mxu0 0.0
    %1225 = vmatprep.subr.mxu0 0.0
    %1226 = vmatpush2.msra.mxu0 0.0
    %1227 = vmatprep.subr.mxu0 0.0
    %1228 = vmatpush2.msra.mxu0 0.0
    %1229 = vmatprep.subr.mxu0 0.0
    %1230 = vmatpush2.msra.mxu0 0.0
    %1231 = vmatprep.subr.mxu0 0.0
    %1232 = vmatpush2.msra.mxu0 0.0
    %1233 = vmatprep.subr.mxu0 0.0
    %1234 = vmatpush2.msra.mxu0 0.0
    %1235 = vmatprep.subr.mxu0 0.0
    %1236 = vmatpush2.msra.mxu0 0.0
    %1237 = vmatprep.subr.mxu0 0.0
    %1238 = vmatpush2.msra.mxu0 0.0
    %1239 = vmatprep.mubr.f32.mxu0 0.0
    %1240 = vmatmul.mubr.f32.gmra.mxu0 %v1173
    %v1241 = vpop.f32.mrf.mxu0
    %v1242 = vadd.f32 0.0, %v1241
    %v1243 = vpop.f32.mrf.mxu0
    %v1244 = vadd.f32 0.0, %v1243
    %1245 = vdwg.mxu0
    %1246 = vmatprep.subr.mxu0 0.0
    %1247 = vmatpush1.msra.mxu0 0.0
    %1248 = vmatprep.subr.mxu0 0.0
    %1249 = vmatpush1.msra.mxu0 0.0
    %1250 = vmatprep.subr.mxu0 0.0
    %1251 = vmatpush1.msra.mxu0 0.0
    %1252 = vmatprep.subr.mxu0 0.0
    %1253 = vmatpush1.msra.mxu0 0.0
    %1254 = vmatprep.subr.mxu0 0.0
    %1255 = vmatpush1.msra.mxu0 0.0
    %1256 = vmatprep.subr.mxu0 0.0
    %1257 = vmatpush1.msra.mxu0 0.0
    %1258 = vmatprep.subr.mxu0 0.0
    %1259 = vmatpush1.msra.mxu0 0.0
    %1260 = vmatprep.subr.mxu0 0.0
    %1261 = vmatpush1.msra.mxu0 0.0
    %1262 = vmatprep.subr.mxu0 0.0
    %1263 = vmatpush1.msra.mxu0 0.0
    %1264 = vmatprep.subr.mxu0 0.0
    %1265 = vmatpush1.msra.mxu0 0.0
    %1266 = vmatprep.subr.mxu0 0.0
    %1267 = vmatpush1.msra.mxu0 0.0
    %1268 = vmatprep.subr.mxu0 0.0
    %1269 = vmatpush1.msra.mxu0 0.0
    %1270 = vmatprep.subr.mxu0 0.0
    %1271 = vmatpush1.msra.mxu0 %v291
    %1272 = vmatprep.subr.mxu0 0.0
    %1273 = vmatpush1.msra.mxu0 %v274
    %1274 = vmatprep.subr.mxu0 0.0
    %1275 = vmatpush1.msra.mxu0 %v271
    %1276 = vmatprep.subr.mxu0 0.0
    %1277 = vmatpush1.msra.mxu0 %v268
    %1278 = vmatprep.subr.mxu0 0.0
    %1279 = vmatpush2.msra.mxu0 0.0
    %1280 = vmatprep.subr.mxu0 0.0
    %1281 = vmatpush2.msra.mxu0 0.0
    %1282 = vmatprep.subr.mxu0 0.0
    %1283 = vmatpush2.msra.mxu0 0.0
    %1284 = vmatprep.subr.mxu0 0.0
    %1285 = vmatpush2.msra.mxu0 0.0
    %1286 = vmatprep.subr.mxu0 0.0
    %1287 = vmatpush2.msra.mxu0 0.0
    %1288 = vmatprep.subr.mxu0 0.0
    %1289 = vmatpush2.msra.mxu0 0.0
    %1290 = vmatprep.subr.mxu0 0.0
    %1291 = vmatpush2.msra.mxu0 0.0
    %1292 = vmatprep.subr.mxu0 0.0
    %1293 = vmatpush2.msra.mxu0 0.0
    %1294 = vmatprep.subr.mxu0 0.0
    %1295 = vmatpush2.msra.mxu0 0.0
    %1296 = vmatprep.subr.mxu0 0.0
    %1297 = vmatpush2.msra.mxu0 0.0
    %1298 = vmatprep.subr.mxu0 0.0
    %1299 = vmatpush2.msra.mxu0 0.0
    %1300 = vmatprep.subr.mxu0 0.0
    %1301 = vmatpush2.msra.mxu0 0.0
    %1302 = vmatprep.subr.mxu0 0.0
    %1303 = vmatpush2.msra.mxu0 0.0
    %1304 = vmatprep.subr.mxu0 0.0
    %1305 = vmatpush2.msra.mxu0 0.0
    %1306 = vmatprep.subr.mxu0 0.0
    %1307 = vmatpush2.msra.mxu0 0.0
    %1308 = vmatprep.subr.mxu0 0.0
    %1309 = vmatpush2.msra.mxu0 0.0
    %1310 = vmatprep.mubr.f32.mxu0 0.0
    %1311 = vmatmul.mubr.f32.gmra.mxu0 %v1173
    %v1312 = vpop.f32.mrf.mxu0
    %v1313 = vadd.f32 0.0, %v1312
    %v1314 = vpop.f32.mrf.mxu0
    %1315 = vdwg.mxu0
    %v1317 = vrot.slane %v1242, 6
    %v1319 = vadd.f32 %v187, %v1317
    %v1320 = vxor.u32 %v1319, 2147483648
    %v1321 = vmul.f32 %v1320, 1.442695
    %v1322 = vpow.pop %v1321
    %v1323 = vadd.f32 %v1322, 1.0
    %v1324 = vrcp.pop %v1323
    %v1325 = vmul.f32 1.0, %v1324
    %v1327 = vrot.slane %v1244, 6
    %v1329 = vadd.f32 %v189, %v1327
    %v1330 = vxor.u32 %v1329, 2147483648
    %v1331 = vmul.f32 %v1330, 1.442695
    %v1332 = vpow.pop %v1331
    %v1333 = vadd.f32 %v1332, 1.0
    %v1334 = vrcp.pop %v1333
    %v1335 = vmul.f32 1.0, %v1334
    %v1336 = vadd.f32 %v1313, %v452
    %v1338 = vrot.slane %v1336, 6
    %v1340 = vmul.f32 %v1325, %v1338
    %v1341 = vadd.f32 %v263, %v1340
    %v1342 = vtanh.pop %v1341
    %v1343 = vsub.f32 1.0, %v1335
    %v1344 = vmul.f32 %v1343, %v1342
    %v1345 = vrot.slane %v1170, 6
    %v1347 = vmul.f32 %v1335, %v1345
    %v1348 = vadd.f32 %v1344, %v1347
    %1349 = vst.msk [vmem:[#allocation2 + $0x8] sm:$0xc] %vm641, %v1348
    %v1351 = vrot.slane %v1348, 2
    %v1352 = vsel %vm279, %v1351, 0
    %1354 = vmatprep.subr.mxu0 0.0
    %1355 = vmatpush1.msra.mxu0 0.0
    %1356 = vmatprep.subr.mxu0 0.0
    %1357 = vmatpush1.msra.mxu0 0.0
    %1358 = vmatprep.subr.mxu0 0.0
    %1359 = vmatpush1.msra.mxu0 0.0
    %1360 = vmatprep.subr.mxu0 0.0
    %1361 = vmatpush1.msra.mxu0 0.0
    %1362 = vmatprep.subr.mxu0 0.0
    %1363 = vmatpush1.msra.mxu0 0.0
    %1364 = vmatprep.subr.mxu0 0.0
    %1365 = vmatpush1.msra.mxu0 0.0
    %1366 = vmatprep.subr.mxu0 0.0
    %1367 = vmatpush1.msra.mxu0 0.0
    %1368 = vmatprep.subr.mxu0 0.0
    %1369 = vmatpush1.msra.mxu0 0.0
    %1370 = vmatprep.subr.mxu0 0.0
    %1371 = vmatpush1.msra.mxu0 0.0
    %1372 = vmatprep.subr.mxu0 0.0
    %1373 = vmatpush1.msra.mxu0 0.0
    %1374 = vmatprep.subr.mxu0 0.0
    %1375 = vmatpush1.msra.mxu0 0.0
    %1376 = vmatprep.subr.mxu0 0.0
    %1377 = vmatpush1.msra.mxu0 0.0
    %1378 = vmatprep.subr.mxu0 %v288
    %1379 = vmatpush1.msra.mxu0 %v285
    %1380 = vmatprep.subr.mxu0 %v273
    %1381 = vmatpush1.msra.mxu0 %v272
    %1382 = vmatprep.subr.mxu0 %v270
    %1383 = vmatpush1.msra.mxu0 %v269
    %1384 = vmatprep.subr.mxu0 %v267
    %1385 = vmatpush1.msra.mxu0 %v266
    %1386 = vmatprep.subr.mxu0 0.0
    %1387 = vmatpush2.msra.mxu0 0.0
    %1388 = vmatprep.subr.mxu0 0.0
    %1389 = vmatpush2.msra.mxu0 0.0
    %1390 = vmatprep.subr.mxu0 0.0
    %1391 = vmatpush2.msra.mxu0 0.0
    %1392 = vmatprep.subr.mxu0 0.0
    %1393 = vmatpush2.msra.mxu0 0.0
    %1394 = vmatprep.subr.mxu0 0.0
    %1395 = vmatpush2.msra.mxu0 0.0
    %1396 = vmatprep.subr.mxu0 0.0
    %1397 = vmatpush2.msra.mxu0 0.0
    %1398 = vmatprep.subr.mxu0 0.0
    %1399 = vmatpush2.msra.mxu0 0.0
    %1400 = vmatprep.subr.mxu0 0.0
    %1401 = vmatpush2.msra.mxu0 0.0
    %1402 = vmatprep.subr.mxu0 0.0
    %1403 = vmatpush2.msra.mxu0 0.0
    %1404 = vmatprep.subr.mxu0 0.0
    %1405 = vmatpush2.msra.mxu0 0.0
    %1406 = vmatprep.subr.mxu0 0.0
    %1407 = vmatpush2.msra.mxu0 0.0
    %1408 = vmatprep.subr.mxu0 0.0
    %1409 = vmatpush2.msra.mxu0 0.0
    %1410 = vmatprep.subr.mxu0 0.0
    %1411 = vmatpush2.msra.mxu0 0.0
    %1412 = vmatprep.subr.mxu0 0.0
    %1413 = vmatpush2.msra.mxu0 0.0
    %1414 = vmatprep.subr.mxu0 0.0
    %1415 = vmatpush2.msra.mxu0 0.0
    %1416 = vmatprep.subr.mxu0 0.0
    %1417 = vmatpush2.msra.mxu0 0.0
    %1418 = vmatprep.mubr.f32.mxu0 0.0
    %1419 = vmatmul.mubr.f32.gmra.mxu0 %v1352
    %v1420 = vpop.f32.mrf.mxu0
    %v1421 = vadd.f32 0.0, %v1420
    %v1422 = vpop.f32.mrf.mxu0
    %v1423 = vadd.f32 0.0, %v1422
    %1424 = vdwg.mxu0
    %1425 = vmatprep.subr.mxu0 0.0
    %1426 = vmatpush1.msra.mxu0 0.0
    %1427 = vmatprep.subr.mxu0 0.0
    %1428 = vmatpush1.msra.mxu0 0.0
    %1429 = vmatprep.subr.mxu0 0.0
    %1430 = vmatpush1.msra.mxu0 0.0
    %1431 = vmatprep.subr.mxu0 0.0
    %1432 = vmatpush1.msra.mxu0 0.0
    %1433 = vmatprep.subr.mxu0 0.0
    %1434 = vmatpush1.msra.mxu0 0.0
    %1435 = vmatprep.subr.mxu0 0.0
    %1436 = vmatpush1.msra.mxu0 0.0
    %1437 = vmatprep.subr.mxu0 0.0
    %1438 = vmatpush1.msra.mxu0 0.0
    %1439 = vmatprep.subr.mxu0 0.0
    %1440 = vmatpush1.msra.mxu0 0.0
    %1441 = vmatprep.subr.mxu0 0.0
    %1442 = vmatpush1.msra.mxu0 0.0
    %1443 = vmatprep.subr.mxu0 0.0
    %1444 = vmatpush1.msra.mxu0 0.0
    %1445 = vmatprep.subr.mxu0 0.0
    %1446 = vmatpush1.msra.mxu0 0.0
    %1447 = vmatprep.subr.mxu0 0.0
    %1448 = vmatpush1.msra.mxu0 0.0
    %1449 = vmatprep.subr.mxu0 0.0
    %1450 = vmatpush1.msra.mxu0 %v291
    %1451 = vmatprep.subr.mxu0 0.0
    %1452 = vmatpush1.msra.mxu0 %v274
    %1453 = vmatprep.subr.mxu0 0.0
    %1454 = vmatpush1.msra.mxu0 %v271
    %1455 = vmatprep.subr.mxu0 0.0
    %1456 = vmatpush1.msra.mxu0 %v268
    %1457 = vmatprep.subr.mxu0 0.0
    %1458 = vmatpush2.msra.mxu0 0.0
    %1459 = vmatprep.subr.mxu0 0.0
    %1460 = vmatpush2.msra.mxu0 0.0
    %1461 = vmatprep.subr.mxu0 0.0
    %1462 = vmatpush2.msra.mxu0 0.0
    %1463 = vmatprep.subr.mxu0 0.0
    %1464 = vmatpush2.msra.mxu0 0.0
    %1465 = vmatprep.subr.mxu0 0.0
    %1466 = vmatpush2.msra.mxu0 0.0
    %1467 = vmatprep.subr.mxu0 0.0
    %1468 = vmatpush2.msra.mxu0 0.0
    %1469 = vmatprep.subr.mxu0 0.0
    %1470 = vmatpush2.msra.mxu0 0.0
    %1471 = vmatprep.subr.mxu0 0.0
    %1472 = vmatpush2.msra.mxu0 0.0
    %1473 = vmatprep.subr.mxu0 0.0
    %1474 = vmatpush2.msra.mxu0 0.0
    %1475 = vmatprep.subr.mxu0 0.0
    %1476 = vmatpush2.msra.mxu0 0.0
    %1477 = vmatprep.subr.mxu0 0.0
    %1478 = vmatpush2.msra.mxu0 0.0
    %1479 = vmatprep.subr.mxu0 0.0
    %1480 = vmatpush2.msra.mxu0 0.0
    %1481 = vmatprep.subr.mxu0 0.0
    %1482 = vmatpush2.msra.mxu0 0.0
    %1483 = vmatprep.subr.mxu0 0.0
    %1484 = vmatpush2.msra.mxu0 0.0
    %1485 = vmatprep.subr.mxu0 0.0
    %1486 = vmatpush2.msra.mxu0 0.0
    %1487 = vmatprep.subr.mxu0 0.0
    %1488 = vmatpush2.msra.mxu0 0.0
    %1489 = vmatprep.mubr.f32.mxu0 0.0
    %1490 = vmatmul.mubr.f32.gmra.mxu0 %v1352
    %v1491 = vpop.f32.mrf.mxu0
    %v1492 = vadd.f32 0.0, %v1491
    %v1493 = vpop.f32.mrf.mxu0
    %1494 = vdwg.mxu0
    %v1496 = vrot.slane %v1421, 4
    %v1498 = vadd.f32 %v187, %v1496
    %v1499 = vxor.u32 %v1498, 2147483648
    %v1500 = vmul.f32 %v1499, 1.442695
    %v1501 = vpow.pop %v1500
    %v1502 = vadd.f32 %v1501, 1.0
    %v1503 = vrcp.pop %v1502
    %v1504 = vmul.f32 1.0, %v1503
    %v1506 = vrot.slane %v1423, 4
    %v1508 = vadd.f32 %v189, %v1506
    %v1509 = vxor.u32 %v1508, 2147483648
    %v1510 = vmul.f32 %v1509, 1.442695
    %v1511 = vpow.pop %v1510
    %v1512 = vadd.f32 %v1511, 1.0
    %v1513 = vrcp.pop %v1512
    %v1514 = vmul.f32 1.0, %v1513
    %v1515 = vadd.f32 %v1492, %v452
    %v1517 = vrot.slane %v1515, 4
    %v1519 = vmul.f32 %v1504, %v1517
    %v1520 = vadd.f32 %v263, %v1519
    %v1521 = vtanh.pop %v1520
    %v1522 = vsub.f32 1.0, %v1514
    %v1523 = vmul.f32 %v1522, %v1521
    %v1524 = vrot.slane %v1348, 6
    %v1526 = vmul.f32 %v1514, %v1524
    %v1527 = vadd.f32 %v1523, %v1526
    %1528 = vst.msk [vmem:[#allocation2 + $0x8] sm:$0x30] %vm821, %v1527
    %v1530 = vrot.slane %v1527, 4
    %v1531 = vsel %vm279, %v1530, 0
    %1533 = vmatprep.subr.mxu0 0.0
    %1534 = vmatpush1.msra.mxu0 0.0
    %1535 = vmatprep.subr.mxu0 0.0
    %1536 = vmatpush1.msra.mxu0 0.0
    %1537 = vmatprep.subr.mxu0 0.0
    %1538 = vmatpush1.msra.mxu0 0.0
    %1539 = vmatprep.subr.mxu0 0.0
    %1540 = vmatpush1.msra.mxu0 0.0
    %1541 = vmatprep.subr.mxu0 0.0
    %1542 = vmatpush1.msra.mxu0 0.0
    %1543 = vmatprep.subr.mxu0 0.0
    %1544 = vmatpush1.msra.mxu0 0.0
    %1545 = vmatprep.subr.mxu0 0.0
    %1546 = vmatpush1.msra.mxu0 0.0
    %1547 = vmatprep.subr.mxu0 0.0
    %1548 = vmatpush1.msra.mxu0 0.0
    %1549 = vmatprep.subr.mxu0 0.0
    %1550 = vmatpush1.msra.mxu0 0.0
    %1551 = vmatprep.subr.mxu0 0.0
    %1552 = vmatpush1.msra.mxu0 0.0
    %1553 = vmatprep.subr.mxu0 0.0
    %1554 = vmatpush1.msra.mxu0 0.0
    %1555 = vmatprep.subr.mxu0 0.0
    %1556 = vmatpush1.msra.mxu0 0.0
    %1557 = vmatprep.subr.mxu0 %v288
    %1558 = vmatpush1.msra.mxu0 %v285
    %1559 = vmatprep.subr.mxu0 %v273
    %1560 = vmatpush1.msra.mxu0 %v272
    %1561 = vmatprep.subr.mxu0 %v270
    %1562 = vmatpush1.msra.mxu0 %v269
    %1563 = vmatprep.subr.mxu0 %v267
    %1564 = vmatpush1.msra.mxu0 %v266
    %1565 = vmatprep.subr.mxu0 0.0
    %1566 = vmatpush2.msra.mxu0 0.0
    %1567 = vmatprep.subr.mxu0 0.0
    %1568 = vmatpush2.msra.mxu0 0.0
    %1569 = vmatprep.subr.mxu0 0.0
    %1570 = vmatpush2.msra.mxu0 0.0
    %1571 = vmatprep.subr.mxu0 0.0
    %1572 = vmatpush2.msra.mxu0 0.0
    %1573 = vmatprep.subr.mxu0 0.0
    %1574 = vmatpush2.msra.mxu0 0.0
    %1575 = vmatprep.subr.mxu0 0.0
    %1576 = vmatpush2.msra.mxu0 0.0
    %1577 = vmatprep.subr.mxu0 0.0
    %1578 = vmatpush2.msra.mxu0 0.0
    %1579 = vmatprep.subr.mxu0 0.0
    %1580 = vmatpush2.msra.mxu0 0.0
    %1581 = vmatprep.subr.mxu0 0.0
    %1582 = vmatpush2.msra.mxu0 0.0
    %1583 = vmatprep.subr.mxu0 0.0
    %1584 = vmatpush2.msra.mxu0 0.0
    %1585 = vmatprep.subr.mxu0 0.0
    %1586 = vmatpush2.msra.mxu0 0.0
    %1587 = vmatprep.subr.mxu0 0.0
    %1588 = vmatpush2.msra.mxu0 0.0
    %1589 = vmatprep.subr.mxu0 0.0
    %1590 = vmatpush2.msra.mxu0 0.0
    %1591 = vmatprep.subr.mxu0 0.0
    %1592 = vmatpush2.msra.mxu0 0.0
    %1593 = vmatprep.subr.mxu0 0.0
    %1594 = vmatpush2.msra.mxu0 0.0
    %1595 = vmatprep.subr.mxu0 0.0
    %1596 = vmatpush2.msra.mxu0 0.0
    %1597 = vmatprep.mubr.f32.mxu0 0.0
    %1598 = vmatmul.mubr.f32.gmra.mxu0 %v1531
    %v1599 = vpop.f32.mrf.mxu0
    %v1600 = vadd.f32 0.0, %v1599
    %v1601 = vpop.f32.mrf.mxu0
    %v1602 = vadd.f32 0.0, %v1601
    %1603 = vdwg.mxu0
    %1604 = vmatprep.subr.mxu0 0.0
    %1605 = vmatpush1.msra.mxu0 0.0
    %1606 = vmatprep.subr.mxu0 0.0
    %1607 = vmatpush1.msra.mxu0 0.0
    %1608 = vmatprep.subr.mxu0 0.0
    %1609 = vmatpush1.msra.mxu0 0.0
    %1610 = vmatprep.subr.mxu0 0.0
    %1611 = vmatpush1.msra.mxu0 0.0
    %1612 = vmatprep.subr.mxu0 0.0
    %1613 = vmatpush1.msra.mxu0 0.0
    %1614 = vmatprep.subr.mxu0 0.0
    %1615 = vmatpush1.msra.mxu0 0.0
    %1616 = vmatprep.subr.mxu0 0.0
    %1617 = vmatpush1.msra.mxu0 0.0
    %1618 = vmatprep.subr.mxu0 0.0
    %1619 = vmatpush1.msra.mxu0 0.0
    %1620 = vmatprep.subr.mxu0 0.0
    %1621 = vmatpush1.msra.mxu0 0.0
    %1622 = vmatprep.subr.mxu0 0.0
    %1623 = vmatpush1.msra.mxu0 0.0
    %1624 = vmatprep.subr.mxu0 0.0
    %1625 = vmatpush1.msra.mxu0 0.0
    %1626 = vmatprep.subr.mxu0 0.0
    %1627 = vmatpush1.msra.mxu0 0.0
    %1628 = vmatprep.subr.mxu0 0.0
    %1629 = vmatpush1.msra.mxu0 %v291
    %1630 = vmatprep.subr.mxu0 0.0
    %1631 = vmatpush1.msra.mxu0 %v274
    %1632 = vmatprep.subr.mxu0 0.0
    %1633 = vmatpush1.msra.mxu0 %v271
    %1634 = vmatprep.subr.mxu0 0.0
    %1635 = vmatpush1.msra.mxu0 %v268
    %1636 = vmatprep.subr.mxu0 0.0
    %1637 = vmatpush2.msra.mxu0 0.0
    %1638 = vmatprep.subr.mxu0 0.0
    %1639 = vmatpush2.msra.mxu0 0.0
    %1640 = vmatprep.subr.mxu0 0.0
    %1641 = vmatpush2.msra.mxu0 0.0
    %1642 = vmatprep.subr.mxu0 0.0
    %1643 = vmatpush2.msra.mxu0 0.0
    %1644 = vmatprep.subr.mxu0 0.0
    %1645 = vmatpush2.msra.mxu0 0.0
    %1646 = vmatprep.subr.mxu0 0.0
    %1647 = vmatpush2.msra.mxu0 0.0
    %1648 = vmatprep.subr.mxu0 0.0
    %1649 = vmatpush2.msra.mxu0 0.0
    %1650 = vmatprep.subr.mxu0 0.0
    %1651 = vmatpush2.msra.mxu0 0.0
    %1652 = vmatprep.subr.mxu0 0.0
    %1653 = vmatpush2.msra.mxu0 0.0
    %1654 = vmatprep.subr.mxu0 0.0
    %1655 = vmatpush2.msra.mxu0 0.0
    %1656 = vmatprep.subr.mxu0 0.0
    %1657 = vmatpush2.msra.mxu0 0.0
    %1658 = vmatprep.subr.mxu0 0.0
    %1659 = vmatpush2.msra.mxu0 0.0
    %1660 = vmatprep.subr.mxu0 0.0
    %1661 = vmatpush2.msra.mxu0 0.0
    %1662 = vmatprep.subr.mxu0 0.0
    %1663 = vmatpush2.msra.mxu0 0.0
    %1664 = vmatprep.subr.mxu0 0.0
    %1665 = vmatpush2.msra.mxu0 0.0
    %1666 = vmatprep.subr.mxu0 0.0
    %1667 = vmatpush2.msra.mxu0 0.0
    %1668 = vmatprep.mubr.f32.mxu0 0.0
    %1669 = vmatmul.mubr.f32.gmra.mxu0 %v1531
    %v1670 = vpop.f32.mrf.mxu0
    %v1671 = vadd.f32 0.0, %v1670
    %v1672 = vpop.f32.mrf.mxu0
    %1673 = vdwg.mxu0
    %v1675 = vrot.slane %v1600, 2
    %v1677 = vadd.f32 %v187, %v1675
    %v1678 = vxor.u32 %v1677, 2147483648
    %v1679 = vmul.f32 %v1678, 1.442695
    %v1680 = vpow.pop %v1679
    %v1681 = vadd.f32 %v1680, 1.0
    %v1682 = vrcp.pop %v1681
    %v1683 = vmul.f32 1.0, %v1682
    %v1685 = vrot.slane %v1602, 2
    %v1687 = vadd.f32 %v189, %v1685
    %v1688 = vxor.u32 %v1687, 2147483648
    %v1689 = vmul.f32 %v1688, 1.442695
    %v1690 = vpow.pop %v1689
    %v1691 = vadd.f32 %v1690, 1.0
    %v1692 = vrcp.pop %v1691
    %v1693 = vmul.f32 1.0, %v1692
    %v1694 = vadd.f32 %v1671, %v452
    %v1696 = vrot.slane %v1694, 2
    %v1698 = vmul.f32 %v1683, %v1696
    %v1699 = vadd.f32 %v263, %v1698
    %v1700 = vtanh.pop %v1699
    %v1701 = vsub.f32 1.0, %v1693
    %v1702 = vmul.f32 %v1701, %v1700
    %v1703 = vrot.slane %v1527, 6
    %v1705 = vmul.f32 %v1693, %v1703
    %v1706 = vadd.f32 %v1702, %v1705
    %1707 = vst.msk [vmem:[#allocation2 + $0x8] sm:$0xc0] %vm1001, %v1706
    %v1708 = vld [vmem:[#allocation2] sm:$0xff]
    %v1709 = vld [vmem:[#allocation2 + $0x8] sm:$0xff]
    %v1710 = vld [vmem:[%s5] sm:$0x1]
    %v1712 = vlaneseq
    %v1713 = vshrl.u32 %v1712, 7
    %v1714 = vsub.s32 0, %v1713
    %v1715 = vrot.slane %v1710, %v1714
    %v1717 = vmul.f32 %v1708, %v1715
    %v1718 = vmul.f32 %v1709, %v1715
    %v1719 = vsel %vm279, %v1717, 0.0
    %1720 = vadd.xlane.f32.xlu0 %v1719
    %v1721 = vpop.xlane.xlu0 %1720
    %v1722 = vsel %vm279, %v1718, 0.0
    %1723 = vadd.xlane.f32.xlu0 %v1722
    %v1724 = vpop.xlane.xlu0 %1723
    %v1725 = vld [vmem:[#allocation3] sm:$0x1]
    %v1727 = vlaneseq
    %v1728 = vshrl.u32 %v1727, 7
    %v1729 = vsub.s32 0, %v1728
    %v1730 = vrot.slane %v1725, %v1729
    %v1732 = vadd.f32 %v1721, %v1730
    %v1733 = vadd.f32 %v1724, %v1730
    %vm1734 = vcmask 7168
    %1735 = vst.msk [vmem:[%s7] sm:$0xff] %vm1734, %v1732
    %1736 = vst.msk [vmem:[%s7 + $0x8] sm:$0xff] %vm1734, %v1733
    // Predicated region
    $region42: #{tpu_custom_call.1} parent=1 // pred_check
      _
    $region43: #{tpu_custom_call.1} parent=1 // pred_check_branch
      %1738 = sbr.rel (0) target = $region45
    $region44: #{tpu_custom_call.1} parent=1 // pred_region
      _
    $region45: #{tpu_custom_call.1} parent=1 // pred_fallthru
      _
    // Predicated region
    $region46: #{tpu_custom_call.1} parent=1 // pred_check
      _
    $region47: #{tpu_custom_call.1} parent=1 // pred_check_branch
      %1740 = sbr.rel (0) target = $region49
    $region48: #{tpu_custom_call.1} parent=1 // pred_region
      _
    $region49: #{tpu_custom_call.1} parent=1 // pred_fallthru
      _
    %1741 = vsyncpa [#allocation5], 1
    %1742 = vsyncpa [#allocation7], 1

</llo_original>
